<compile_context>
chip_gen: v5e
topology: v5e:2x2
jax: 0.10.0
libtpu: 0.0.40
codegen_flags: <defaults>
</compile_context>

<pallas_src>
import functools

import numpy as np
import jax
import jax.numpy as jnp
from jax.experimental import pallas as pl
from jax.experimental.pallas import tpu as pltpu

# ----------------------------- model dimensions -----------------------------
BATCH = 2
INPUT_SIZE = 16
OUTPUT_SIZE = 8
CONTROLLER_SIZE = 32     # H
MEMORY_N = 32            # memory slots
MEMORY_M = 16            # word size
SEQ_LEN = 8              # number of fused forward() steps

H, M, N, IN = CONTROLLER_SIZE, MEMORY_M, MEMORY_N, INPUT_SIZE
RH = M + 6               # read-head projection width (key, beta, g, shift, gamma)
WH = 3 * M + 6           # write-head projection width (+ erase, add)
CIN = IN + M + H         # fused controller-input width: [x | prev_read | h]

# lane layout of the packed per-step output slab AND of the initial-state slab
SLAB_W = 256
OFF_OUT = 0              # 8  lanes: network output
OFF_H = 32               # 32 lanes: controller h
OFF_C = 64               # 32 lanes: controller c
OFF_R = 96               # 32 lanes: read-address state
OFF_W = 128              # 32 lanes: write-address state
OFF_READ = 160           # 16 lanes: read vector (previous_read for next step)


# ----------------------------- shared math ----------------------------------
def _softmax(x, axis):
    m = jnp.max(x, axis=axis, keepdims=True)
    e = jnp.exp(x - m)
    return e / jnp.sum(e, axis=axis, keepdims=True)


def _softplus(x):
    # F.softplus with beta=1, threshold=20
    safe = jnp.minimum(x, 20.0)
    return jnp.where(x > 20.0, x, jnp.log(1.0 + jnp.exp(safe)))


# ----------------------------- Pallas kernel --------------------------------
def _ntm_kernel(x_ref, mem0_ref, state0_ref, w_in_ref, b_in_ref,
                w_heads_ref, b_heads_ref, w_out_ref, b_out_ref, shiftmat_ref,
                slab_ref, mem_out_ref,
                mem_s, cin_s, c_s, rw_s, ho_s, *, use_tpu_roll):
    t = pl.program_id(0)

    # ---- one-time state initialization (t == 0) -----------------------------
    @pl.when(t == 0)
    def _init():
        mem_s[...] = mem0_ref[...]
        cin_s[...] = jnp.zeros((BATCH, CIN), jnp.float32)
        cin_s[:, IN:IN + M] = state0_ref[:, OFF_READ:OFF_READ + M]      # prev_read
        cin_s[:, IN + M:IN + M + H] = state0_ref[:, OFF_H:OFF_H + H]    # h
        c_s[...] = state0_ref[:, OFF_C:OFF_C + H]
        rw_s[0:BATCH, :] = state0_ref[:, OFF_R:OFF_R + N]               # read state
        rw_s[BATCH:2 * BATCH, :] = state0_ref[:, OFF_W:OFF_W + N]       # write state
        ho_s[...] = jnp.zeros((2 * BATCH, 32), jnp.float32)

    # ---- stream this step's x into the fused controller-input slab ----------
    cin_s[:, 0:IN] = x_ref[...]

    # ---- controller: LSTMCell on [x | prev_read | h]  (one fused matmul) -----
    gates = (jnp.dot(cin_s[...], w_in_ref[...],
                     preferred_element_type=jnp.float32) + b_in_ref[...])
    i_g = jax.nn.sigmoid(gates[:, 0:H])
    f_g = jax.nn.sigmoid(gates[:, H:2 * H])
    g_g = jnp.tanh(gates[:, 2 * H:3 * H])
    o_g = jax.nn.sigmoid(gates[:, 3 * H:4 * H])
    c_new = f_g * c_s[...] + i_g * g_g
    h_new = o_g * jnp.tanh(c_new)
    c_s[...] = c_new
    cin_s[:, IN + M:IN + M + H] = h_new

    # ---- read + write head projections (one fused matmul) -------------------
    heads = (jnp.dot(h_new, w_heads_ref[...],
                     preferred_element_type=jnp.float32) + b_heads_ref[...])

    # stack both heads' addressing fields along the sublane axis -> (2B, RH)
    ho_s[0:BATCH, 0:RH] = heads[:, 0:RH]
    ho_s[BATCH:2 * BATCH, 0:RH] = heads[:, RH:2 * RH]
    ho = ho_s[...]

    key = ho[:, 0:M] + 1e-8
    beta = _softplus(ho[:, M:M + 1])
    g_int = jax.nn.sigmoid(ho[:, M + 1:M + 2])
    shift = _softmax(ho[:, M + 2:M + 5], axis=1)
    gamma = 1.0 + _softplus(ho[:, M + 5:M + 6])

    mem = mem_s[...]
    a = mem + 1e-8
    a2 = jnp.concatenate([a, a], axis=0)                      # both heads, same memory
    num = jnp.sum(a2 * key[:, None, :], axis=2)               # (2B, N)
    na = jnp.sqrt(jnp.sum(a2 * a2, axis=2))                   # (2B, N)
    nk = jnp.sqrt(jnp.sum(key * key, axis=1, keepdims=True))  # (2B, 1)
    cos = num / jnp.maximum(na * nk, 1e-8)
    w_context = _softmax(beta * cos, axis=1)
    # interpolation(w_context, w_prev, g) == g * w_prev + (1 - g) * w_context
    w_interp = g_int * rw_s[...] + (1.0 - g_int) * w_context

    # circular conv_shift
    if use_tpu_roll:
        w_m1 = pltpu.roll(w_interp, 1, axis=1)                # w[:, (j-1) % N]
        w_p1 = pltpu.roll(w_interp, N - 1, axis=1)            # w[:, (j+1) % N]
    else:
        rolled = jnp.dot(w_interp, shiftmat_ref[...],
                         preferred_element_type=jnp.float32)
        w_m1 = rolled[:, 0:N]
        w_p1 = rolled[:, N:2 * N]
    w_shift = (shift[:, 0:1] * w_m1 + shift[:, 1:2] * w_interp
               + shift[:, 2:3] * w_p1)

    # sharpen (per-row normalization; clamp guards log of underflowed weights)
    power = jnp.exp(gamma * jnp.log(jnp.maximum(w_shift, 1e-30)))
    w_addr = power / (jnp.sum(power, axis=1, keepdims=True) + 1e-8)
    rw_s[...] = w_addr
    w_read = w_addr[0:BATCH]
    w_write = w_addr[BATCH:2 * BATCH]

    # ---- read_memory (reproduces the PyTorch batch-summed broadcast) --------
    w_total = jnp.sum(w_read, axis=0, keepdims=True)          # (1, N)
    read = jnp.sum(w_total[:, :, None] * mem, axis=1)         # (B, M)
    cin_s[:, IN:IN + M] = read                                # prev_read for t+1

    # ---- write_memory --------------------------------------------------------
    erase = jax.nn.sigmoid(heads[:, RH + M + 6:RH + 2 * M + 6])
    add = heads[:, RH + 2 * M + 6:RH + 3 * M + 6]
    mem_s[...] = (mem * (1.0 - w_write[:, :, None] * erase[:, None, :])
                  + w_write[:, :, None] * add[:, None, :])

    # ---- output layer on [read | h] (weight rows pre-reordered to match) -----
    out = jax.nn.sigmoid(
        jnp.dot(cin_s[:, IN:IN + M + H], w_out_ref[...],
                preferred_element_type=jnp.float32) + b_out_ref[...])

    # ---- lane-dense per-step output slab -------------------------------------
    slab_ref[...] = jnp.zeros((BATCH, SLAB_W), jnp.float32)
    slab_ref[:, OFF_OUT:OFF_OUT + OUTPUT_SIZE] = out
    slab_ref[:, OFF_H:OFF_H + H] = h_new
    slab_ref[:, OFF_C:OFF_C + H] = c_new
    slab_ref[:, OFF_R:OFF_R + N] = w_read
    slab_ref[:, OFF_W:OFF_W + N] = w_write
    slab_ref[:, OFF_READ:OFF_READ + M] = read

    # ---- final memory written back once --------------------------------------
    @pl.when(t == pl.num_programs(0) - 1)
    def _final():
        mem_out_ref[...] = mem_s[...]


# ------------------------- pltpu.roll capability probe ----------------------
def _roll_probe_kernel(x_ref, o_ref):
    o_ref[0] = pltpu.roll(x_ref[...], 1, axis=1)
    o_ref[1] = pltpu.roll(x_ref[...], x_ref.shape[1] - 1, axis=1)


def _pltpu_roll_is_usable():
    """Prefer pltpu.roll (XLU, no MXU push / constant operand); verify once that
    it lowers and matches jnp.roll at the exact (2B, N) shape, else fall back to
    the in-kernel circulant-matmul shift."""
    rows = 2 * BATCH
    x = jnp.arange(rows * N, dtype=jnp.float32).reshape(rows, N)
    want = jnp.stack([jnp.roll(x, 1, axis=1), jnp.roll(x, -1, axis=1)], axis=0)
    try:
        got = pl.pallas_call(
            _roll_probe_kernel,
            out_shape=jax.ShapeDtypeStruct((2, rows, N), jnp.float32),
        )(x)
        return bool(jnp.array_equal(got, want))
    except Exception:
        return False


# ----------------------------- wrapper ---------------------------------------
def ntm_forward_pallas(x_seq, mem0, state0, w_in, b_in, w_heads, b_heads,
                       w_out, b_out, shiftmat, *, use_tpu_roll):
    seq_len = x_seq.shape[0]

    def full(arr):
        return pl.BlockSpec(arr.shape, lambda t, nd=arr.ndim: (0,) * nd)

    grid_spec = pltpu.PrefetchScalarGridSpec(
        num_scalar_prefetch=0,
        grid=(seq_len,),
        in_specs=[
            pl.BlockSpec((None, BATCH, INPUT_SIZE), lambda t: (t, 0, 0)),  # x_t streamed
            full(mem0), full(state0),
            full(w_in), full(b_in),
            full(w_heads), full(b_heads),
            full(w_out), full(b_out),
            full(shiftmat),
        ],
        out_specs=[
            pl.BlockSpec((None, BATCH, SLAB_W), lambda t: (t, 0, 0)),       # per-step slab
            pl.BlockSpec((BATCH, MEMORY_N, MEMORY_M), lambda t: (0, 0, 0)),  # final memory
        ],
        scratch_shapes=[
            pltpu.VMEM((BATCH, MEMORY_N, MEMORY_M), jnp.float32),  # resident memory
            pltpu.VMEM((BATCH, CIN), jnp.float32),                 # [x | read | h]
            pltpu.VMEM((BATCH, H), jnp.float32),                   # c
            pltpu.VMEM((2 * BATCH, MEMORY_N), jnp.float32),        # stacked r/w states
            pltpu.VMEM((2 * BATCH, 32), jnp.float32),              # stacked head fields
        ],
    )
    out_shapes = (
        jax.ShapeDtypeStruct((seq_len, BATCH, SLAB_W), jnp.float32),
        jax.ShapeDtypeStruct((BATCH, MEMORY_N, MEMORY_M), jnp.float32),
    )
    return pl.pallas_call(
        functools.partial(_ntm_kernel, use_tpu_roll=use_tpu_roll),
        grid_spec=grid_spec,
        out_shape=out_shapes,
        compiler_params=pltpu.CompilerParams(
            dimension_semantics=("arbitrary",)),   # sequential recurrence over T
    )(x_seq, mem0, state0, w_in, b_in, w_heads, b_heads, w_out, b_out, shiftmat)


# ----------------- deterministic parameters / initial state ------------------
def build_inputs(key_params, key_x, seq_len=SEQ_LEN):
    f32 = jnp.float32
    ks = jax.random.split(key_params, 12)
    ortho = jax.nn.initializers.orthogonal()

    # nn.LSTMCell(input_size + M, H)
    w_ih = ortho(ks[0], (4 * H, IN + M), f32)
    w_hh = ortho(ks[1], (4 * H, H), f32)
    b_ih = 0.01 * jax.random.normal(ks[2], (4 * H,), f32)
    b_hh = 0.01 * jax.random.normal(ks[3], (4 * H,), f32)

    def linear(kw, kb, out_f, in_f):
        w = ortho(kw, (out_f, in_f), f32)
        bound = 1.0 / np.sqrt(in_f)
        b = jax.random.uniform(kb, (out_f,), f32, -bound, bound)
        return w, b

    w_read, b_read = linear(ks[4], ks[5], RH, H)              # fc_read_head
    w_write, b_write = linear(ks[6], ks[7], WH, H)            # fc_write_head
    w_out, b_out = linear(ks[8], ks[9], OUTPUT_SIZE, H + M)   # fc_output

    init_mem = 0.05 * jax.random.normal(ks[10], (N, M), f32)
    init_read_bias = 0.05 * jax.random.normal(ks[11], (1, M), f32)

    # ---- fused / packed operands for the kernel ------------------------------
    w_in = jnp.concatenate([w_ih.T, w_hh.T], axis=0)          # (IN+M+H, 4H)
    b_in = (b_ih + b_hh).reshape(1, -1)
    w_heads = jnp.concatenate([w_read.T, w_write.T], axis=1)  # (H, RH+WH)
    b_heads = jnp.concatenate([b_read, b_write]).reshape(1, -1)
    # fc_output consumes cat([h, read]); kernel feeds [read | h] -> reorder rows
    w_out_t = w_out.T                                         # (H+M, OUT)
    w_out_ro = jnp.concatenate([w_out_t[H:H + M], w_out_t[0:H]], axis=0)
    b_out_2d = b_out.reshape(1, -1)

    # circulant shift matrix for the fallback conv_shift path:
    # (w @ shiftmat)[:, :N] == w[:, (j-1) % N],  [:, N:] == w[:, (j+1) % N]
    eye = jnp.eye(N, dtype=f32)
    shiftmat = jnp.concatenate(
        [jnp.roll(eye, 1, axis=1), jnp.roll(eye, -1, axis=1)], axis=1)

    # ---- initial state per reset(), packed into one lane-dense slab ----------
    memory0 = jnp.tile(init_mem[None], (BATCH, 1, 1))
    state0 = jnp.zeros((BATCH, SLAB_W), f32)
    state0 = state0.at[:, OFF_H:OFF_H + H].set(1.0)           # h = ones
    state0 = state0.at[:, OFF_C:OFF_C + H].set(1.0)           # c = ones
    state0 = state0.at[:, OFF_READ:OFF_READ + M].set(
        jnp.tile(init_read_bias, (BATCH, 1)))                 # previous_read
    # read_state / write_state start at zero (slab already zero there)

    x_seq = jax.random.normal(key_x, (seq_len, BATCH, IN), f32)

    return (x_seq, memory0, state0, w_in, b_in, w_heads, b_heads,
            w_out_ro, b_out_2d, shiftmat)


# ----------------------------- pure-JAX reference ----------------------------
def _address_ref(fields, w_prev, mem):
    key = fields[:, 0:M] + 1e-8
    beta = _softplus(fields[:, M:M + 1])
    g = jax.nn.sigmoid(fields[:, M + 1:M + 2])
    shift = _softmax(fields[:, M + 2:M + 5], axis=1)
    gamma = 1.0 + _softplus(fields[:, M + 5:M + 6])
    a = mem + 1e-8
    num = jnp.sum(a * key[:, None, :], axis=2)
    na = jnp.sqrt(jnp.sum(a * a, axis=2))
    nk = jnp.sqrt(jnp.sum(key * key, axis=1, keepdims=True))
    cos = num / jnp.maximum(na * nk, 1e-8)
    w_context = _softmax(beta * cos, axis=1)
    w_interp = g * w_prev + (1.0 - g) * w_context
    w_shift = (shift[:, 0:1] * jnp.roll(w_interp, 1, axis=1)
               + shift[:, 1:2] * w_interp
               + shift[:, 2:3] * jnp.roll(w_interp, -1, axis=1))
    power = jnp.exp(gamma * jnp.log(jnp.maximum(w_shift, 1e-30)))
    return power / (jnp.sum(power, axis=1, keepdims=True) + 1e-8)


def ntm_reference(x_seq, mem0, state0, w_in, b_in, w_heads, b_heads, w_out, b_out):
    mem = mem0
    h = state0[:, OFF_H:OFF_H + H]
    c = state0[:, OFF_C:OFF_C + H]
    r_state = state0[:, OFF_R:OFF_R + N]
    w_state = state0[:, OFF_W:OFF_W + N]
    prev_read = state0[:, OFF_READ:OFF_READ + M]

    outs, hs, cs, wrs, wws, reads = [], [], [], [], [], []
    for t in range(x_seq.shape[0]):
        cin = jnp.concatenate([x_seq[t], prev_read, h], axis=1)
        gates = jnp.dot(cin, w_in) + b_in
        i_g = jax.nn.sigmoid(gates[:, 0:H])
        f_g = jax.nn.sigmoid(gates[:, H:2 * H])
        g_g = jnp.tanh(gates[:, 2 * H:3 * H])
        o_g = jax.nn.sigmoid(gates[:, 3 * H:4 * H])
        c = f_g * c + i_g * g_g
        h = o_g * jnp.tanh(c)

        heads = jnp.dot(h, w_heads) + b_heads
        read_out = heads[:, 0:RH]
        write_out = heads[:, RH:RH + WH]

        w_read = _address_ref(read_out, r_state, mem)
        w_total = jnp.sum(w_read, axis=0, keepdims=True)      # PyTorch broadcast quirk
        read = jnp.sum(w_total[:, :, None] * mem, axis=1)

        w_write = _address_ref(write_out, w_state, mem)
        erase = jax.nn.sigmoid(write_out[:, M + 6:2 * M + 6])
        add = write_out[:, 2 * M + 6:3 * M + 6]
        mem = (mem * (1.0 - w_write[:, :, None] * erase[:, None, :])
               + w_write[:, :, None] * add[:, None, :])

        out = jax.nn.sigmoid(
            jnp.dot(jnp.concatenate([read, h], axis=1), w_out) + b_out)

        r_state, w_state, prev_read = w_read, w_write, read
        outs.append(out); hs.append(h); cs.append(c)
        wrs.append(w_read); wws.append(w_write); reads.append(read)

    stk = lambda xs: jnp.stack(xs, axis=0)
    return stk(outs), stk(hs), stk(cs), stk(wrs), stk(wws), stk(reads), mem


# ----------------------------- test driver -----------------------------------
if __name__ == "__main__":
    key = jax.random.PRNGKey(0)
    k_params, k_x = jax.random.split(key)
    operands = build_inputs(k_params, k_x)

    use_tpu_roll = _pltpu_roll_is_usable()

    slab, mem_final = jax.block_until_ready(
        ntm_forward_pallas(*operands, use_tpu_roll=use_tpu_roll))

    (ref_out, ref_h, ref_c, ref_wr, ref_ww, ref_read, ref_mem) = \
        jax.block_until_ready(ntm_reference(*operands[:9]))

    slab_np = np.asarray(slab)
    checks = [
        (slab_np[:, :, OFF_OUT:OFF_OUT + OUTPUT_SIZE], ref_out),
        (slab_np[:, :, OFF_H:OFF_H + H], ref_h),
        (slab_np[:, :, OFF_C:OFF_C + H], ref_c),
        (slab_np[:, :, OFF_R:OFF_R + N], ref_wr),
        (slab_np[:, :, OFF_W:OFF_W + N], ref_ww),
        (slab_np[:, :, OFF_READ:OFF_READ + M], ref_read),
        (np.asarray(mem_final), ref_mem),
    ]
    for got, want in checks:
        np.testing.assert_allclose(got, np.asarray(want), rtol=1e-3, atol=1e-4)

    assert slab.shape == (SEQ_LEN, BATCH, SLAB_W)
    assert mem_final.shape == (BATCH, MEMORY_N, MEMORY_M)
    assert np.all(np.isfinite(slab_np))
    print("KERNEL_OK")
</pallas_src>

<mosaic_0001>
module attributes {stable_mosaic.version = 11 : i64} {
  func.func @_roll_probe_kernel(%arg0: memref<4x32xf32, #tpu.memory_space<vmem>>, %arg1: memref<2x4x32xf32, #tpu.memory_space<vmem>>) attributes {dimension_semantics = [], scalar_prefetch = 0 : i64, scratch_operands = 0 : i64, tpu.core_type = #tpu.core_type<tc>} {
    %c0 = arith.constant 0 : index
    %c0_0 = arith.constant 0 : index
    %0 = vector.load %arg0[%c0, %c0_0] : memref<4x32xf32, #tpu.memory_space<vmem>>, vector<4x32xf32>
    %c1_i32 = arith.constant 1 : i32
    %1 = tpu.dynamic_rotate %0 by %c1_i32 dim 1 : vector<4x32xf32>, i32 -> vector<4x32xf32>
    %c0_1 = arith.constant 0 : index
    %c0_2 = arith.constant 0 : index
    %c0_3 = arith.constant 0 : index
    %2 = vector.load %arg1[%c0_1, %c0_2, %c0_3] : memref<2x4x32xf32, #tpu.memory_space<vmem>>, vector<1x4x32xf32>
    %3 = vector.shape_cast %2 : vector<1x4x32xf32> to vector<4x32xf32>
    %4 = vector.shape_cast %1 : vector<4x32xf32> to vector<1x4x32xf32>
    tpu.vector_store %arg1[%c0_1, %c0_2, %c0_3], %4 {strides = array<i32>} : memref<2x4x32xf32, #tpu.memory_space<vmem>>, vector<1x4x32xf32>,
    %c0_4 = arith.constant 0 : index
    %c0_5 = arith.constant 0 : index
    %5 = vector.load %arg0[%c0_4, %c0_5] : memref<4x32xf32, #tpu.memory_space<vmem>>, vector<4x32xf32>
    %c31_i32 = arith.constant 31 : i32
    %6 = tpu.dynamic_rotate %5 by %c31_i32 dim 1 : vector<4x32xf32>, i32 -> vector<4x32xf32>
    %c1 = arith.constant 1 : index
    %c0_6 = arith.constant 0 : index
    %c0_7 = arith.constant 0 : index
    %7 = vector.load %arg1[%c1, %c0_6, %c0_7] : memref<2x4x32xf32, #tpu.memory_space<vmem>>, vector<1x4x32xf32>
    %8 = vector.shape_cast %7 : vector<1x4x32xf32> to vector<4x32xf32>
    %9 = vector.shape_cast %6 : vector<4x32xf32> to vector<1x4x32xf32>
    tpu.vector_store %arg1[%c1, %c0_6, %c0_7], %9 {strides = array<i32>} : memref<2x4x32xf32, #tpu.memory_space<vmem>>, vector<1x4x32xf32>,
    return
  }
}

module attributes {stable_mosaic.version = 11 : i64} {
  func.func @_ntm_kernel(%arg0: i32, %arg1: memref<1x2x16xf32, #tpu.memory_space<vmem>>, %arg2: memref<2x32x16xf32, #tpu.memory_space<vmem>>, %arg3: memref<2x256xf32, #tpu.memory_space<vmem>>, %arg4: memref<64x128xf32, #tpu.memory_space<vmem>>, %arg5: memref<1x128xf32, #tpu.memory_space<vmem>>, %arg6: memref<32x76xf32, #tpu.memory_space<vmem>>, %arg7: memref<1x76xf32, #tpu.memory_space<vmem>>, %arg8: memref<48x8xf32, #tpu.memory_space<vmem>>, %arg9: memref<1x8xf32, #tpu.memory_space<vmem>>, %arg10: memref<32x64xf32, #tpu.memory_space<vmem>>, %arg11: memref<1x2x256xf32, #tpu.memory_space<vmem>>, %arg12: memref<2x32x16xf32, #tpu.memory_space<vmem>>, %arg13: memref<2x32x16xf32, #tpu.memory_space<vmem>>, %arg14: memref<2x64xf32, #tpu.memory_space<vmem>>, %arg15: memref<2x32xf32, #tpu.memory_space<vmem>>, %arg16: memref<4x32xf32, #tpu.memory_space<vmem>>, %arg17: memref<4x32xf32, #tpu.memory_space<vmem>>) attributes {dimension_semantics = [#tpu.dimension_semantics<arbitrary>], iteration_bounds = array<i64: 8>, scalar_prefetch = 0 : i64, scratch_operands = 5 : i64, tpu.core_type = #tpu.core_type<tc>, window_params = [{transform_indices = @transform_0, window_bounds = array<i64: 1, 2, 16>}, {pipeline_mode = #tpu.pipeline_mode<synchronous>, transform_indices = @transform_1, window_bounds = array<i64: 2, 32, 16>}, {pipeline_mode = #tpu.pipeline_mode<synchronous>, transform_indices = @transform_2, window_bounds = array<i64: 2, 256>}, {pipeline_mode = #tpu.pipeline_mode<synchronous>, transform_indices = @transform_3, window_bounds = array<i64: 64, 128>}, {pipeline_mode = #tpu.pipeline_mode<synchronous>, transform_indices = @transform_4, window_bounds = array<i64: 1, 128>}, {pipeline_mode = #tpu.pipeline_mode<synchronous>, transform_indices = @transform_5, window_bounds = array<i64: 32, 76>}, {pipeline_mode = #tpu.pipeline_mode<synchronous>, transform_indices = @transform_6, window_bounds = array<i64: 1, 76>}, {pipeline_mode = #tpu.pipeline_mode<synchronous>, transform_indices = @transform_7, window_bounds = array<i64: 48, 8>}, {pipeline_mode = #tpu.pipeline_mode<synchronous>, transform_indices = @transform_8, window_bounds = array<i64: 1, 8>}, {pipeline_mode = #tpu.pipeline_mode<synchronous>, transform_indices = @transform_9, window_bounds = array<i64: 32, 64>}, {transform_indices = @transform_10, window_bounds = array<i64: 1, 2, 256>}, {pipeline_mode = #tpu.pipeline_mode<synchronous>, transform_indices = @transform_11, window_bounds = array<i64: 2, 32, 16>}]} {
    %c0_i32 = arith.constant 0 : i32
    %0 = arith.cmpi eq, %arg0, %c0_i32 : i32
    %1 = arith.extui %0 : i1 to i32
    %c0_i32_0 = arith.constant 0 : i32
    %2 = arith.cmpi ne, %1, %c0_i32_0 : i32
    scf.if %2 {
      %c0_96 = arith.constant 0 : index
      %c0_97 = arith.constant 0 : index
      %c0_98 = arith.constant 0 : index
      %225 = vector.load %arg2[%c0_96, %c0_97, %c0_98] : memref<2x32x16xf32, #tpu.memory_space<vmem>>, vector<2x32x16xf32>
      %c0_99 = arith.constant 0 : index
      %c0_100 = arith.constant 0 : index
      %c0_101 = arith.constant 0 : index
      %226 = vector.load %arg13[%c0_99, %c0_100, %c0_101] : memref<2x32x16xf32, #tpu.memory_space<vmem>>, vector<2x32x16xf32>
      tpu.vector_store %arg13[%c0_99, %c0_100, %c0_101], %225 {strides = array<i32>} : memref<2x32x16xf32, #tpu.memory_space<vmem>>, vector<2x32x16xf32>,
      %cst_102 = arith.constant 0.000000e+00 : f32
      %227 = vector.broadcast %cst_102 : f32 to vector<2x64xf32>
      %c0_103 = arith.constant 0 : index
      %c0_104 = arith.constant 0 : index
      %228 = vector.load %arg14[%c0_103, %c0_104] : memref<2x64xf32, #tpu.memory_space<vmem>>, vector<2x64xf32>
      tpu.vector_store %arg14[%c0_103, %c0_104], %227 {strides = array<i32>} : memref<2x64xf32, #tpu.memory_space<vmem>>, vector<2x64xf32>,
      %c0_105 = arith.constant 0 : index
      %c160_106 = arith.constant 160 : index
      %229 = vector.load %arg3[%c0_105, %c160_106] : memref<2x256xf32, #tpu.memory_space<vmem>>, vector<2x16xf32>
      %c0_107 = arith.constant 0 : index
      %c16_108 = arith.constant 16 : index
      %230 = vector.load %arg14[%c0_107, %c16_108] : memref<2x64xf32, #tpu.memory_space<vmem>>, vector<2x16xf32>
      tpu.vector_store %arg14[%c0_107, %c16_108], %229 {strides = array<i32>} : memref<2x64xf32, #tpu.memory_space<vmem>>, vector<2x16xf32>,
      %c0_109 = arith.constant 0 : index
      %c32_110 = arith.constant 32 : index
      %231 = vector.load %arg3[%c0_109, %c32_110] : memref<2x256xf32, #tpu.memory_space<vmem>>, vector<2x32xf32>
      %c0_111 = arith.constant 0 : index
      %c32_112 = arith.constant 32 : index
      %232 = vector.load %arg14[%c0_111, %c32_112] : memref<2x64xf32, #tpu.memory_space<vmem>>, vector<2x32xf32>
      tpu.vector_store %arg14[%c0_111, %c32_112], %231 {strides = array<i32>} : memref<2x64xf32, #tpu.memory_space<vmem>>, vector<2x32xf32>,
      %c0_113 = arith.constant 0 : index
      %c64_114 = arith.constant 64 : index
      %233 = vector.load %arg3[%c0_113, %c64_114] : memref<2x256xf32, #tpu.memory_space<vmem>>, vector<2x32xf32>
      %c0_115 = arith.constant 0 : index
      %c0_116 = arith.constant 0 : index
      %234 = vector.load %arg15[%c0_115, %c0_116] : memref<2x32xf32, #tpu.memory_space<vmem>>, vector<2x32xf32>
      tpu.vector_store %arg15[%c0_115, %c0_116], %233 {strides = array<i32>} : memref<2x32xf32, #tpu.memory_space<vmem>>, vector<2x32xf32>,
      %c0_117 = arith.constant 0 : index
      %c96_118 = arith.constant 96 : index
      %235 = vector.load %arg3[%c0_117, %c96_118] : memref<2x256xf32, #tpu.memory_space<vmem>>, vector<2x32xf32>
      %c0_119 = arith.constant 0 : index
      %c0_120 = arith.constant 0 : index
      %236 = vector.load %arg16[%c0_119, %c0_120] : memref<4x32xf32, #tpu.memory_space<vmem>>, vector<2x32xf32>
      tpu.vector_store %arg16[%c0_119, %c0_120], %235 {strides = array<i32>} : memref<4x32xf32, #tpu.memory_space<vmem>>, vector<2x32xf32>,
      %c0_121 = arith.constant 0 : index
      %c128_122 = arith.constant 128 : index
      %237 = vector.load %arg3[%c0_121, %c128_122] : memref<2x256xf32, #tpu.memory_space<vmem>>, vector<2x32xf32>
      %c2_123 = arith.constant 2 : index
      %c0_124 = arith.constant 0 : index
      %238 = vector.load %arg16[%c2_123, %c0_124] : memref<4x32xf32, #tpu.memory_space<vmem>>, vector<2x32xf32>
      tpu.vector_store %arg16[%c2_123, %c0_124], %237 {strides = array<i32>} : memref<4x32xf32, #tpu.memory_space<vmem>>, vector<2x32xf32>,
      %cst_125 = arith.constant 0.000000e+00 : f32
      %239 = vector.broadcast %cst_125 : f32 to vector<4x32xf32>
      %c0_126 = arith.constant 0 : index
      %c0_127 = arith.constant 0 : index
      %240 = vector.load %arg17[%c0_126, %c0_127] : memref<4x32xf32, #tpu.memory_space<vmem>>, vector<4x32xf32>
      tpu.vector_store %arg17[%c0_126, %c0_127], %239 {strides = array<i32>} : memref<4x32xf32, #tpu.memory_space<vmem>>, vector<4x32xf32>,
    } else {
    }
    %c0 = arith.constant 0 : index
    %c0_1 = arith.constant 0 : index
    %c0_2 = arith.constant 0 : index
    %3 = vector.load %arg1[%c0, %c0_1, %c0_2] : memref<1x2x16xf32, #tpu.memory_space<vmem>>, vector<1x2x16xf32>
    %4 = vector.shape_cast %3 : vector<1x2x16xf32> to vector<2x16xf32>
    %c0_3 = arith.constant 0 : index
    %c0_4 = arith.constant 0 : index
    %5 = vector.load %arg14[%c0_3, %c0_4] : memref<2x64xf32, #tpu.memory_space<vmem>>, vector<2x16xf32>
    tpu.vector_store %arg14[%c0_3, %c0_4], %4 {strides = array<i32>} : memref<2x64xf32, #tpu.memory_space<vmem>>, vector<2x16xf32>,
    %c0_5 = arith.constant 0 : index
    %c0_6 = arith.constant 0 : index
    %6 = vector.load %arg14[%c0_5, %c0_6] : memref<2x64xf32, #tpu.memory_space<vmem>>, vector<2x64xf32>
    %c0_7 = arith.constant 0 : index
    %c0_8 = arith.constant 0 : index
    %7 = vector.load %arg4[%c0_7, %c0_8] : memref<64x128xf32, #tpu.memory_space<vmem>>, vector<64x128xf32>
    %cst = arith.constant dense<0.000000e+00> : vector<2x128xf32>
    %8 = tpu.matmul %6, %7, %cst {dimension_numbers = #tpu.dot_dimension_numbers<[1], [0], [0], [1], [0, 0, 1, 1], [], []>} : vector<2x64xf32>, vector<64x128xf32>, vector<2x128xf32> -> vector<2x128xf32>
    %c0_9 = arith.constant 0 : index
    %c0_10 = arith.constant 0 : index
    %9 = vector.load %arg5[%c0_9, %c0_10] : memref<1x128xf32, #tpu.memory_space<vmem>>, vector<1x128xf32>
    %10 = vector.broadcast %9 : vector<1x128xf32> to vector<2x128xf32>
    %11 = arith.addf %8, %10 : vector<2x128xf32>
    %12 = vector.extract_strided_slice %11 {offsets = [0, 0], sizes = [2, 32], strides = [1, 1]} : vector<2x128xf32> to vector<2x32xf32>
    %13 = arith.negf %12 : vector<2x32xf32>
    %14 = math.exp %13 : vector<2x32xf32>
    %cst_11 = arith.constant 1.000000e+00 : f32
    %15 = vector.broadcast %cst_11 : f32 to vector<2x32xf32>
    %16 = arith.addf %15, %14 : vector<2x32xf32>
    %17 = arith.divf %15, %16 : vector<2x32xf32>
    %18 = vector.extract_strided_slice %11 {offsets = [0, 32], sizes = [2, 32], strides = [1, 1]} : vector<2x128xf32> to vector<2x32xf32>
    %19 = arith.negf %18 : vector<2x32xf32>
    %20 = math.exp %19 : vector<2x32xf32>
    %cst_12 = arith.constant 1.000000e+00 : f32
    %21 = vector.broadcast %cst_12 : f32 to vector<2x32xf32>
    %22 = arith.addf %21, %20 : vector<2x32xf32>
    %23 = arith.divf %21, %22 : vector<2x32xf32>
    %24 = vector.extract_strided_slice %11 {offsets = [0, 64], sizes = [2, 32], strides = [1, 1]} : vector<2x128xf32> to vector<2x32xf32>
    %25 = math.tanh %24 : vector<2x32xf32>
    %26 = vector.extract_strided_slice %11 {offsets = [0, 96], sizes = [2, 32], strides = [1, 1]} : vector<2x128xf32> to vector<2x32xf32>
    %27 = arith.negf %26 : vector<2x32xf32>
    %28 = math.exp %27 : vector<2x32xf32>
    %cst_13 = arith.constant 1.000000e+00 : f32
    %29 = vector.broadcast %cst_13 : f32 to vector<2x32xf32>
    %30 = arith.addf %29, %28 : vector<2x32xf32>
    %31 = arith.divf %29, %30 : vector<2x32xf32>
    %c0_14 = arith.constant 0 : index
    %c0_15 = arith.constant 0 : index
    %32 = vector.load %arg15[%c0_14, %c0_15] : memref<2x32xf32, #tpu.memory_space<vmem>>, vector<2x32xf32>
    %33 = arith.mulf %23, %32 : vector<2x32xf32>
    %34 = arith.mulf %17, %25 : vector<2x32xf32>
    %35 = arith.addf %33, %34 : vector<2x32xf32>
    %36 = math.tanh %35 : vector<2x32xf32>
    %37 = arith.mulf %31, %36 : vector<2x32xf32>
    %c0_16 = arith.constant 0 : index
    %c0_17 = arith.constant 0 : index
    %38 = vector.load %arg15[%c0_16, %c0_17] : memref<2x32xf32, #tpu.memory_space<vmem>>, vector<2x32xf32>
    tpu.vector_store %arg15[%c0_16, %c0_17], %35 {strides = array<i32>} : memref<2x32xf32, #tpu.memory_space<vmem>>, vector<2x32xf32>,
    %c0_18 = arith.constant 0 : index
    %c32 = arith.constant 32 : index
    %39 = vector.load %arg14[%c0_18, %c32] : memref<2x64xf32, #tpu.memory_space<vmem>>, vector<2x32xf32>
    tpu.vector_store %arg14[%c0_18, %c32], %37 {strides = array<i32>} : memref<2x64xf32, #tpu.memory_space<vmem>>, vector<2x32xf32>,
    %c0_19 = arith.constant 0 : index
    %c0_20 = arith.constant 0 : index
    %40 = vector.load %arg6[%c0_19, %c0_20] : memref<32x76xf32, #tpu.memory_space<vmem>>, vector<32x76xf32>
    %cst_21 = arith.constant dense<0.000000e+00> : vector<2x76xf32>
    %41 = tpu.matmul %37, %40, %cst_21 {dimension_numbers = #tpu.dot_dimension_numbers<[1], [0], [0], [1], [0, 0, 1, 1], [], []>} : vector<2x32xf32>, vector<32x76xf32>, vector<2x76xf32> -> vector<2x76xf32>
    %c0_22 = arith.constant 0 : index
    %c0_23 = arith.constant 0 : index
    %42 = vector.load %arg7[%c0_22, %c0_23] : memref<1x76xf32, #tpu.memory_space<vmem>>, vector<1x76xf32>
    %43 = vector.broadcast %42 : vector<1x76xf32> to vector<2x76xf32>
    %44 = arith.addf %41, %43 : vector<2x76xf32>
    %45 = vector.extract_strided_slice %44 {offsets = [0, 0], sizes = [2, 22], strides = [1, 1]} : vector<2x76xf32> to vector<2x22xf32>
    %c0_24 = arith.constant 0 : index
    %c0_25 = arith.constant 0 : index
    %46 = vector.load %arg17[%c0_24, %c0_25] : memref<4x32xf32, #tpu.memory_space<vmem>>, vector<2x22xf32>
    tpu.vector_store %arg17[%c0_24, %c0_25], %45 {strides = array<i32>} : memref<4x32xf32, #tpu.memory_space<vmem>>, vector<2x22xf32>,
    %47 = vector.extract_strided_slice %44 {offsets = [0, 22], sizes = [2, 22], strides = [1, 1]} : vector<2x76xf32> to vector<2x22xf32>
    %c2 = arith.constant 2 : index
    %c0_26 = arith.constant 0 : index
    %48 = vector.load %arg17[%c2, %c0_26] : memref<4x32xf32, #tpu.memory_space<vmem>>, vector<2x22xf32>
    tpu.vector_store %arg17[%c2, %c0_26], %47 {strides = array<i32>} : memref<4x32xf32, #tpu.memory_space<vmem>>, vector<2x22xf32>,
    %c0_27 = arith.constant 0 : index
    %c0_28 = arith.constant 0 : index
    %49 = vector.load %arg17[%c0_27, %c0_28] : memref<4x32xf32, #tpu.memory_space<vmem>>, vector<4x32xf32>
    %50 = vector.extract_strided_slice %49 {offsets = [0, 0], sizes = [4, 16], strides = [1, 1]} : vector<4x32xf32> to vector<4x16xf32>
    %cst_29 = arith.constant 9.99999993E-9 : f32
    %51 = vector.broadcast %cst_29 : f32 to vector<4x16xf32>
    %52 = arith.addf %50, %51 : vector<4x16xf32>
    %53 = vector.extract_strided_slice %49 {offsets = [0, 16], sizes = [4, 1], strides = [1, 1]} : vector<4x32xf32> to vector<4x1xf32>
    %cst_30 = arith.constant 2.000000e+01 : f32
    %54 = vector.broadcast %cst_30 : f32 to vector<4x1xf32>
    %55 = arith.minimumf %53, %54 : vector<4x1xf32>
    %cst_31 = arith.constant 2.000000e+01 : f32
    %56 = vector.broadcast %cst_31 : f32 to vector<4x1xf32>
    %57 = arith.cmpf ogt, %53, %56 : vector<4x1xf32>
    %58 = math.exp %55 : vector<4x1xf32>
    %cst_32 = arith.constant 1.000000e+00 : f32
    %59 = vector.broadcast %cst_32 : f32 to vector<4x1xf32>
    %60 = arith.addf %59, %58 : vector<4x1xf32>
    %61 = math.log %60 : vector<4x1xf32>
    %62 = arith.select %57, %53, %61 : vector<4x1xi1>, vector<4x1xf32>
    %63 = vector.extract_strided_slice %49 {offsets = [0, 17], sizes = [4, 1], strides = [1, 1]} : vector<4x32xf32> to vector<4x1xf32>
    %64 = arith.negf %63 : vector<4x1xf32>
    %65 = math.exp %64 : vector<4x1xf32>
    %cst_33 = arith.constant 1.000000e+00 : f32
    %66 = vector.broadcast %cst_33 : f32 to vector<4x1xf32>
    %67 = arith.addf %66, %65 : vector<4x1xf32>
    %68 = arith.divf %66, %67 : vector<4x1xf32>
    %69 = vector.extract_strided_slice %49 {offsets = [0, 18], sizes = [4, 3], strides = [1, 1]} : vector<4x32xf32> to vector<4x3xf32>
    %cst_34 = arith.constant dense<0xFF800000> : vector<4xf32>
    %70 = vector.multi_reduction <maximumf>, %69, %cst_34 [1] : vector<4x3xf32> to vector<4xf32>
    %71 = vector.shape_cast %70 : vector<4xf32> to vector<4x1xf32>
    %72 = vector.broadcast %71 : vector<4x1xf32> to vector<4x3xf32>
    %73 = arith.subf %69, %72 : vector<4x3xf32>
    %74 = math.exp %73 : vector<4x3xf32>
    %cst_35 = arith.constant dense<0.000000e+00> : vector<4xf32>
    %75 = vector.multi_reduction <add>, %74, %cst_35 [1] : vector<4x3xf32> to vector<4xf32>
    %76 = vector.shape_cast %75 : vector<4xf32> to vector<4x1xf32>
    %77 = vector.broadcast %76 : vector<4x1xf32> to vector<4x3xf32>
    %78 = arith.divf %74, %77 : vector<4x3xf32>
    %79 = vector.extract_strided_slice %49 {offsets = [0, 21], sizes = [4, 1], strides = [1, 1]} : vector<4x32xf32> to vector<4x1xf32>
    %cst_36 = arith.constant 2.000000e+01 : f32
    %80 = vector.broadcast %cst_36 : f32 to vector<4x1xf32>
    %81 = arith.minimumf %79, %80 : vector<4x1xf32>
    %cst_37 = arith.constant 2.000000e+01 : f32
    %82 = vector.broadcast %cst_37 : f32 to vector<4x1xf32>
    %83 = arith.cmpf ogt, %79, %82 : vector<4x1xf32>
    %84 = math.exp %81 : vector<4x1xf32>
    %cst_38 = arith.constant 1.000000e+00 : f32
    %85 = vector.broadcast %cst_38 : f32 to vector<4x1xf32>
    %86 = arith.addf %85, %84 : vector<4x1xf32>
    %87 = math.log %86 : vector<4x1xf32>
    %88 = arith.select %83, %79, %87 : vector<4x1xi1>, vector<4x1xf32>
    %cst_39 = arith.constant 1.000000e+00 : f32
    %89 = vector.broadcast %cst_39 : f32 to vector<4x1xf32>
    %90 = arith.addf %89, %88 : vector<4x1xf32>
    %c0_40 = arith.constant 0 : index
    %c0_41 = arith.constant 0 : index
    %c0_42 = arith.constant 0 : index
    %91 = vector.load %arg13[%c0_40, %c0_41, %c0_42] : memref<2x32x16xf32, #tpu.memory_space<vmem>>, vector<2x32x16xf32>
    %cst_43 = arith.constant 9.99999993E-9 : f32
    %92 = vector.broadcast %cst_43 : f32 to vector<2x32x16xf32>
    %93 = arith.addf %91, %92 : vector<2x32x16xf32>
    %94 = tpu.concatenate %93, %93 in 0 : vector<2x32x16xf32>, vector<2x32x16xf32> -> vector<4x32x16xf32>
    %95 = vector.shape_cast %52 : vector<4x16xf32> to vector<4x1x16xf32>
    %96 = vector.broadcast %95 : vector<4x1x16xf32> to vector<4x32x16xf32>
    %97 = arith.mulf %94, %96 : vector<4x32x16xf32>
    %cst_44 = arith.constant dense<0.000000e+00> : vector<4x32xf32>
    %98 = vector.multi_reduction <add>, %97, %cst_44 [2] : vector<4x32x16xf32> to vector<4x32xf32>
    %99 = arith.mulf %94, %94 : vector<4x32x16xf32>
    %cst_45 = arith.constant dense<0.000000e+00> : vector<4x32xf32>
    %100 = vector.multi_reduction <add>, %99, %cst_45 [2] : vector<4x32x16xf32> to vector<4x32xf32>
    %101 = math.sqrt %100 : vector<4x32xf32>
    %102 = arith.mulf %52, %52 : vector<4x16xf32>
    %cst_46 = arith.constant dense<0.000000e+00> : vector<4xf32>
    %103 = vector.multi_reduction <add>, %102, %cst_46 [1] : vector<4x16xf32> to vector<4xf32>
    %104 = vector.shape_cast %103 : vector<4xf32> to vector<4x1xf32>
    %105 = math.sqrt %104 : vector<4x1xf32>
    %106 = vector.broadcast %105 : vector<4x1xf32> to vector<4x32xf32>
    %107 = arith.mulf %101, %106 : vector<4x32xf32>
    %cst_47 = arith.constant 9.99999993E-9 : f32
    %108 = vector.broadcast %cst_47 : f32 to vector<4x32xf32>
    %109 = arith.maximumf %107, %108 : vector<4x32xf32>
    %110 = arith.divf %98, %109 : vector<4x32xf32>
    %111 = vector.broadcast %62 : vector<4x1xf32> to vector<4x32xf32>
    %112 = arith.mulf %111, %110 : vector<4x32xf32>
    %cst_48 = arith.constant dense<0xFF800000> : vector<4xf32>
    %113 = vector.multi_reduction <maximumf>, %112, %cst_48 [1] : vector<4x32xf32> to vector<4xf32>
    %114 = vector.shape_cast %113 : vector<4xf32> to vector<4x1xf32>
    %115 = vector.broadcast %114 : vector<4x1xf32> to vector<4x32xf32>
    %116 = arith.subf %112, %115 : vector<4x32xf32>
    %117 = math.exp %116 : vector<4x32xf32>
    %cst_49 = arith.constant dense<0.000000e+00> : vector<4xf32>
    %118 = vector.multi_reduction <add>, %117, %cst_49 [1] : vector<4x32xf32> to vector<4xf32>
    %119 = vector.shape_cast %118 : vector<4xf32> to vector<4x1xf32>
    %120 = vector.broadcast %119 : vector<4x1xf32> to vector<4x32xf32>
    %121 = arith.divf %117, %120 : vector<4x32xf32>
    %c0_50 = arith.constant 0 : index
    %c0_51 = arith.constant 0 : index
    %122 = vector.load %arg16[%c0_50, %c0_51] : memref<4x32xf32, #tpu.memory_space<vmem>>, vector<4x32xf32>
    %123 = vector.broadcast %68 : vector<4x1xf32> to vector<4x32xf32>
    %124 = arith.mulf %123, %122 : vector<4x32xf32>
    %cst_52 = arith.constant 1.000000e+00 : f32
    %125 = vector.broadcast %cst_52 : f32 to vector<4x1xf32>
    %126 = arith.subf %125, %68 : vector<4x1xf32>
    %127 = vector.broadcast %126 : vector<4x1xf32> to vector<4x32xf32>
    %128 = arith.mulf %127, %121 : vector<4x32xf32>
    %129 = arith.addf %124, %128 : vector<4x32xf32>
    %c0_53 = arith.constant 0 : index
    %c0_54 = arith.constant 0 : index
    %130 = vector.load %arg10[%c0_53, %c0_54] : memref<32x64xf32, #tpu.memory_space<vmem>>, vector<32x64xf32>
    %cst_55 = arith.constant dense<0.000000e+00> : vector<4x64xf32>
    %131 = tpu.matmul %129, %130, %cst_55 {dimension_numbers = #tpu.dot_dimension_numbers<[1], [0], [0], [1], [0, 0, 1, 1], [], []>} : vector<4x32xf32>, vector<32x64xf32>, vector<4x64xf32> -> vector<4x64xf32>
    %132 = vector.extract_strided_slice %131 {offsets = [0, 0], sizes = [4, 32], strides = [1, 1]} : vector<4x64xf32> to vector<4x32xf32>
    %133 = vector.extract_strided_slice %131 {offsets = [0, 32], sizes = [4, 32], strides = [1, 1]} : vector<4x64xf32> to vector<4x32xf32>
    %134 = vector.extract_strided_slice %78 {offsets = [0, 0], sizes = [4, 1], strides = [1, 1]} : vector<4x3xf32> to vector<4x1xf32>
    %135 = vector.broadcast %134 : vector<4x1xf32> to vector<4x32xf32>
    %136 = arith.mulf %135, %132 : vector<4x32xf32>
    %137 = vector.extract_strided_slice %78 {offsets = [0, 1], sizes = [4, 1], strides = [1, 1]} : vector<4x3xf32> to vector<4x1xf32>
    %138 = vector.broadcast %137 : vector<4x1xf32> to vector<4x32xf32>
    %139 = arith.mulf %138, %129 : vector<4x32xf32>
    %140 = arith.addf %136, %139 : vector<4x32xf32>
    %141 = vector.extract_strided_slice %78 {offsets = [0, 2], sizes = [4, 1], strides = [1, 1]} : vector<4x3xf32> to vector<4x1xf32>
    %142 = vector.broadcast %141 : vector<4x1xf32> to vector<4x32xf32>
    %143 = arith.mulf %142, %133 : vector<4x32xf32>
    %144 = arith.addf %140, %143 : vector<4x32xf32>
    %cst_56 = arith.constant 1.000000e-30 : f32
    %145 = vector.broadcast %cst_56 : f32 to vector<4x32xf32>
    %146 = arith.maximumf %144, %145 : vector<4x32xf32>
    %147 = math.log %146 : vector<4x32xf32>
    %148 = vector.broadcast %90 : vector<4x1xf32> to vector<4x32xf32>
    %149 = arith.mulf %148, %147 : vector<4x32xf32>
    %150 = math.exp %149 : vector<4x32xf32>
    %cst_57 = arith.constant dense<0.000000e+00> : vector<4xf32>
    %151 = vector.multi_reduction <add>, %150, %cst_57 [1] : vector<4x32xf32> to vector<4xf32>
    %152 = vector.shape_cast %151 : vector<4xf32> to vector<4x1xf32>
    %cst_58 = arith.constant 9.99999993E-9 : f32
    %153 = vector.broadcast %cst_58 : f32 to vector<4x1xf32>
    %154 = arith.addf %152, %153 : vector<4x1xf32>
    %155 = vector.broadcast %154 : vector<4x1xf32> to vector<4x32xf32>
    %156 = arith.divf %150, %155 : vector<4x32xf32>
    %c0_59 = arith.constant 0 : index
    %c0_60 = arith.constant 0 : index
    %157 = vector.load %arg16[%c0_59, %c0_60] : memref<4x32xf32, #tpu.memory_space<vmem>>, vector<4x32xf32>
    tpu.vector_store %arg16[%c0_59, %c0_60], %156 {strides = array<i32>} : memref<4x32xf32, #tpu.memory_space<vmem>>, vector<4x32xf32>,
    %158 = vector.extract_strided_slice %156 {offsets = [0, 0], sizes = [2, 32], strides = [1, 1]} : vector<4x32xf32> to vector<2x32xf32>
    %159 = vector.extract_strided_slice %156 {offsets = [2, 0], sizes = [2, 32], strides = [1, 1]} : vector<4x32xf32> to vector<2x32xf32>
    %cst_61 = arith.constant dense<0.000000e+00> : vector<32xf32>
    %160 = vector.multi_reduction <add>, %158, %cst_61 [0] : vector<2x32xf32> to vector<32xf32>
    %161 = vector.shape_cast %160 : vector<32xf32> to vector<1x32xf32>
    %162 = vector.shape_cast %161 : vector<1x32xf32> to vector<1x32x1xf32>
    %163 = vector.broadcast %162 : vector<1x32x1xf32> to vector<2x32x16xf32>
    %164 = arith.mulf %163, %91 : vector<2x32x16xf32>
    %cst_62 = arith.constant dense<0.000000e+00> : vector<2x16xf32>
    %165 = vector.multi_reduction <add>, %164, %cst_62 [1] : vector<2x32x16xf32> to vector<2x16xf32>
    %c0_63 = arith.constant 0 : index
    %c16 = arith.constant 16 : index
    %166 = vector.load %arg14[%c0_63, %c16] : memref<2x64xf32, #tpu.memory_space<vmem>>, vector<2x16xf32>
    tpu.vector_store %arg14[%c0_63, %c16], %165 {strides = array<i32>} : memref<2x64xf32, #tpu.memory_space<vmem>>, vector<2x16xf32>,
    %167 = vector.extract_strided_slice %44 {offsets = [0, 44], sizes = [2, 16], strides = [1, 1]} : vector<2x76xf32> to vector<2x16xf32>
    %168 = arith.negf %167 : vector<2x16xf32>
    %169 = math.exp %168 : vector<2x16xf32>
    %cst_64 = arith.constant 1.000000e+00 : f32
    %170 = vector.broadcast %cst_64 : f32 to vector<2x16xf32>
    %171 = arith.addf %170, %169 : vector<2x16xf32>
    %172 = arith.divf %170, %171 : vector<2x16xf32>
    %173 = vector.extract_strided_slice %44 {offsets = [0, 60], sizes = [2, 16], strides = [1, 1]} : vector<2x76xf32> to vector<2x16xf32>
    %174 = vector.shape_cast %159 : vector<2x32xf32> to vector<2x32x1xf32>
    %175 = vector.shape_cast %172 : vector<2x16xf32> to vector<2x1x16xf32>
    %176 = vector.broadcast %174 : vector<2x32x1xf32> to vector<2x32x16xf32>
    %177 = vector.broadcast %175 : vector<2x1x16xf32> to vector<2x32x16xf32>
    %178 = arith.mulf %176, %177 : vector<2x32x16xf32>
    %cst_65 = arith.constant 1.000000e+00 : f32
    %179 = vector.broadcast %cst_65 : f32 to vector<2x32x16xf32>
    %180 = arith.subf %179, %178 : vector<2x32x16xf32>
    %181 = arith.mulf %91, %180 : vector<2x32x16xf32>
    %182 = vector.shape_cast %159 : vector<2x32xf32> to vector<2x32x1xf32>
    %183 = vector.shape_cast %173 : vector<2x16xf32> to vector<2x1x16xf32>
    %184 = vector.broadcast %182 : vector<2x32x1xf32> to vector<2x32x16xf32>
    %185 = vector.broadcast %183 : vector<2x1x16xf32> to vector<2x32x16xf32>
    %186 = arith.mulf %184, %185 : vector<2x32x16xf32>
    %187 = arith.addf %181, %186 : vector<2x32x16xf32>
    %c0_66 = arith.constant 0 : index
    %c0_67 = arith.constant 0 : index
    %c0_68 = arith.constant 0 : index
    %188 = vector.load %arg13[%c0_66, %c0_67, %c0_68] : memref<2x32x16xf32, #tpu.memory_space<vmem>>, vector<2x32x16xf32>
    tpu.vector_store %arg13[%c0_66, %c0_67, %c0_68], %187 {strides = array<i32>} : memref<2x32x16xf32, #tpu.memory_space<vmem>>, vector<2x32x16xf32>,
    %c0_69 = arith.constant 0 : index
    %c16_70 = arith.constant 16 : index
    %189 = vector.load %arg14[%c0_69, %c16_70] : memref<2x64xf32, #tpu.memory_space<vmem>>, vector<2x48xf32>
    %c0_71 = arith.constant 0 : index
    %c0_72 = arith.constant 0 : index
    %190 = vector.load %arg8[%c0_71, %c0_72] : memref<48x8xf32, #tpu.memory_space<vmem>>, vector<48x8xf32>
    %cst_73 = arith.constant dense<0.000000e+00> : vector<2x8xf32>
    %191 = tpu.matmul %189, %190, %cst_73 {dimension_numbers = #tpu.dot_dimension_numbers<[1], [0], [0], [1], [0, 0, 1, 1], [], []>} : vector<2x48xf32>, vector<48x8xf32>, vector<2x8xf32> -> vector<2x8xf32>
    %c0_74 = arith.constant 0 : index
    %c0_75 = arith.constant 0 : index
    %192 = vector.load %arg9[%c0_74, %c0_75] : memref<1x8xf32, #tpu.memory_space<vmem>>, vector<1x8xf32>
    %193 = vector.broadcast %192 : vector<1x8xf32> to vector<2x8xf32>
    %194 = arith.addf %191, %193 : vector<2x8xf32>
    %195 = arith.negf %194 : vector<2x8xf32>
    %196 = math.exp %195 : vector<2x8xf32>
    %cst_76 = arith.constant 1.000000e+00 : f32
    %197 = vector.broadcast %cst_76 : f32 to vector<2x8xf32>
    %198 = arith.addf %197, %196 : vector<2x8xf32>
    %199 = arith.divf %197, %198 : vector<2x8xf32>
    %cst_77 = arith.constant 0.000000e+00 : f32
    %200 = vector.broadcast %cst_77 : f32 to vector<2x256xf32>
    %c0_78 = arith.constant 0 : index
    %c0_79 = arith.constant 0 : index
    %c0_80 = arith.constant 0 : index
    %201 = vector.load %arg11[%c0_78, %c0_79, %c0_80] : memref<1x2x256xf32, #tpu.memory_space<vmem>>, vector<1x2x256xf32>
    %202 = vector.shape_cast %201 : vector<1x2x256xf32> to vector<2x256xf32>
    %203 = vector.shape_cast %200 : vector<2x256xf32> to vector<1x2x256xf32>
    tpu.vector_store %arg11[%c0_78, %c0_79, %c0_80], %203 {strides = array<i32>} : memref<1x2x256xf32, #tpu.memory_space<vmem>>, vector<1x2x256xf32>,
    %c0_81 = arith.constant 0 : index
    %c0_82 = arith.constant 0 : index
    %c0_83 = arith.constant 0 : index
    %204 = vector.load %arg11[%c0_81, %c0_82, %c0_83] : memref<1x2x256xf32, #tpu.memory_space<vmem>>, vector<1x2x8xf32>
    %205 = vector.shape_cast %204 : vector<1x2x8xf32> to vector<2x8xf32>
    %206 = vector.shape_cast %199 : vector<2x8xf32> to vector<1x2x8xf32>
    tpu.vector_store %arg11[%c0_81, %c0_82, %c0_83], %206 {strides = array<i32>} : memref<1x2x256xf32, #tpu.memory_space<vmem>>, vector<1x2x8xf32>,
    %c0_84 = arith.constant 0 : index
    %c0_85 = arith.constant 0 : index
    %c32_86 = arith.constant 32 : index
    %207 = vector.load %arg11[%c0_84, %c0_85, %c32_86] : memref<1x2x256xf32, #tpu.memory_space<vmem>>, vector<1x2x32xf32>
    %208 = vector.shape_cast %207 : vector<1x2x32xf32> to vector<2x32xf32>
    %209 = vector.shape_cast %37 : vector<2x32xf32> to vector<1x2x32xf32>
    tpu.vector_store %arg11[%c0_84, %c0_85, %c32_86], %209 {strides = array<i32>} : memref<1x2x256xf32, #tpu.memory_space<vmem>>, vector<1x2x32xf32>,
    %c0_87 = arith.constant 0 : index
    %c0_88 = arith.constant 0 : index
    %c64 = arith.constant 64 : index
    %210 = vector.load %arg11[%c0_87, %c0_88, %c64] : memref<1x2x256xf32, #tpu.memory_space<vmem>>, vector<1x2x32xf32>
    %211 = vector.shape_cast %210 : vector<1x2x32xf32> to vector<2x32xf32>
    %212 = vector.shape_cast %35 : vector<2x32xf32> to vector<1x2x32xf32>
    tpu.vector_store %arg11[%c0_87, %c0_88, %c64], %212 {strides = array<i32>} : memref<1x2x256xf32, #tpu.memory_space<vmem>>, vector<1x2x32xf32>,
    %c0_89 = arith.constant 0 : index
    %c0_90 = arith.constant 0 : index
    %c96 = arith.constant 96 : index
    %213 = vector.load %arg11[%c0_89, %c0_90, %c96] : memref<1x2x256xf32, #tpu.memory_space<vmem>>, vector<1x2x32xf32>
    %214 = vector.shape_cast %213 : vector<1x2x32xf32> to vector<2x32xf32>
    %215 = vector.shape_cast %158 : vector<2x32xf32> to vector<1x2x32xf32>
    tpu.vector_store %arg11[%c0_89, %c0_90, %c96], %215 {strides = array<i32>} : memref<1x2x256xf32, #tpu.memory_space<vmem>>, vector<1x2x32xf32>,
    %c0_91 = arith.constant 0 : index
    %c0_92 = arith.constant 0 : index
    %c128 = arith.constant 128 : index
    %216 = vector.load %arg11[%c0_91, %c0_92, %c128] : memref<1x2x256xf32, #tpu.memory_space<vmem>>, vector<1x2x32xf32>
    %217 = vector.shape_cast %216 : vector<1x2x32xf32> to vector<2x32xf32>
    %218 = vector.shape_cast %159 : vector<2x32xf32> to vector<1x2x32xf32>
    tpu.vector_store %arg11[%c0_91, %c0_92, %c128], %218 {strides = array<i32>} : memref<1x2x256xf32, #tpu.memory_space<vmem>>, vector<1x2x32xf32>,
    %c0_93 = arith.constant 0 : index
    %c0_94 = arith.constant 0 : index
    %c160 = arith.constant 160 : index
    %219 = vector.load %arg11[%c0_93, %c0_94, %c160] : memref<1x2x256xf32, #tpu.memory_space<vmem>>, vector<1x2x16xf32>
    %220 = vector.shape_cast %219 : vector<1x2x16xf32> to vector<2x16xf32>
    %221 = vector.shape_cast %165 : vector<2x16xf32> to vector<1x2x16xf32>
    tpu.vector_store %arg11[%c0_93, %c0_94, %c160], %221 {strides = array<i32>} : memref<1x2x256xf32, #tpu.memory_space<vmem>>, vector<1x2x16xf32>,
    %c7_i32 = arith.constant 7 : i32
    %222 = arith.cmpi eq, %arg0, %c7_i32 : i32
    %223 = arith.extui %222 : i1 to i32
    %c0_i32_95 = arith.constant 0 : i32
    %224 = arith.cmpi ne, %223, %c0_i32_95 : i32
    scf.if %224 {
      %c0_96 = arith.constant 0 : index
      %c0_97 = arith.constant 0 : index
      %c0_98 = arith.constant 0 : index
      %225 = vector.load %arg13[%c0_96, %c0_97, %c0_98] : memref<2x32x16xf32, #tpu.memory_space<vmem>>, vector<2x32x16xf32>
      %c0_99 = arith.constant 0 : index
      %c0_100 = arith.constant 0 : index
      %c0_101 = arith.constant 0 : index
      %226 = vector.load %arg12[%c0_99, %c0_100, %c0_101] : memref<2x32x16xf32, #tpu.memory_space<vmem>>, vector<2x32x16xf32>
      tpu.vector_store %arg12[%c0_99, %c0_100, %c0_101], %225 {strides = array<i32>} : memref<2x32x16xf32, #tpu.memory_space<vmem>>, vector<2x32x16xf32>,
    } else {
    }
    return
  }
  func.func @transform_0(%arg0: i32) -> (i32, i32, i32) {
    %c0_i32 = arith.constant 0 : i32
    %c0_i32_0 = arith.constant 0 : i32
    %c0_i32_1 = arith.constant 0 : i32
    return %arg0, %c0_i32, %c0_i32_0 : i32, i32, i32
  }
  func.func @transform_1(%arg0: i32) -> (i32, i32, i32) {
    %c0_i32 = arith.constant 0 : i32
    %c0_i32_0 = arith.constant 0 : i32
    %c0_i32_1 = arith.constant 0 : i32
    %c0_i32_2 = arith.constant 0 : i32
    return %c0_i32, %c0_i32_0, %c0_i32_1 : i32, i32, i32
  }
  func.func @transform_2(%arg0: i32) -> (i32, i32) {
    %c0_i32 = arith.constant 0 : i32
    %c0_i32_0 = arith.constant 0 : i32
    %c0_i32_1 = arith.constant 0 : i32
    return %c0_i32, %c0_i32_0 : i32, i32
  }
  func.func @transform_3(%arg0: i32) -> (i32, i32) {
    %c0_i32 = arith.constant 0 : i32
    %c0_i32_0 = arith.constant 0 : i32
    %c0_i32_1 = arith.constant 0 : i32
    return %c0_i32, %c0_i32_0 : i32, i32
  }
  func.func @transform_4(%arg0: i32) -> (i32, i32) {
    %c0_i32 = arith.constant 0 : i32
    %c0_i32_0 = arith.constant 0 : i32
    %c0_i32_1 = arith.constant 0 : i32
    return %c0_i32, %c0_i32_0 : i32, i32
  }
  func.func @transform_5(%arg0: i32) -> (i32, i32) {
    %c0_i32 = arith.constant 0 : i32
    %c0_i32_0 = arith.constant 0 : i32
    %c0_i32_1 = arith.constant 0 : i32
    return %c0_i32, %c0_i32_0 : i32, i32
  }
  func.func @transform_6(%arg0: i32) -> (i32, i32) {
    %c0_i32 = arith.constant 0 : i32
    %c0_i32_0 = arith.constant 0 : i32
    %c0_i32_1 = arith.constant 0 : i32
    return %c0_i32, %c0_i32_0 : i32, i32
  }
  func.func @transform_7(%arg0: i32) -> (i32, i32) {
    %c0_i32 = arith.constant 0 : i32
    %c0_i32_0 = arith.constant 0 : i32
    %c0_i32_1 = arith.constant 0 : i32
    return %c0_i32, %c0_i32_0 : i32, i32
  }
  func.func @transform_8(%arg0: i32) -> (i32, i32) {
    %c0_i32 = arith.constant 0 : i32
    %c0_i32_0 = arith.constant 0 : i32
    %c0_i32_1 = arith.constant 0 : i32
    return %c0_i32, %c0_i32_0 : i32, i32
  }
  func.func @transform_9(%arg0: i32) -> (i32, i32) {
    %c0_i32 = arith.constant 0 : i32
    %c0_i32_0 = arith.constant 0 : i32
    %c0_i32_1 = arith.constant 0 : i32
    return %c0_i32, %c0_i32_0 : i32, i32
  }
  func.func @transform_10(%arg0: i32) -> (i32, i32, i32) {
    %c0_i32 = arith.constant 0 : i32
    %c0_i32_0 = arith.constant 0 : i32
    %c0_i32_1 = arith.constant 0 : i32
    return %arg0, %c0_i32, %c0_i32_0 : i32, i32, i32
  }
  func.func @transform_11(%arg0: i32) -> (i32, i32, i32) {
    %c0_i32 = arith.constant 0 : i32
    %c0_i32_0 = arith.constant 0 : i32
    %c0_i32_1 = arith.constant 0 : i32
    %c0_i32_2 = arith.constant 0 : i32
    return %c0_i32, %c0_i32_0, %c0_i32_1 : i32, i32, i32
  }
}

</mosaic_0001>

<llo_original>
// kernel: tpu_custom_call.1
$region0: #{tpu_custom_call.1}
  #allocation0 [shape = 'u32[]', space=smem, size = 0x4, offset = 0x4, fixed_abs, tag = 'smem constant byte address 0x4 - core index']
  #allocation1 [shape = 'u32[72,128]{1,0:T(1,128)}', space=vmem, size = 0x9000, scoped, tag = 'internal scratch']
  %s0 = inlined_call_operand.hbm [shape: f32[4,32], index: 0, kind: input, shape index: {}]
  %s1 = inlined_call_operand.hbm [shape: f32[2,4,32], index: 1, kind: output, shape index: {}]
  %s2 = sld [smem:[#allocation0]]
  $region18: #{tpu_custom_call.1} parent=0
    _
  %s4 = ssub.s32 1, %s2
  %s5 = scalar_select 0, %s4, %s2
  $region1: #{tpu_custom_call.1} parent=0
    #allocation2 [shape = 'u8[2048]{0}', space=vmem, size = 0x800, scoped, tag = 'input window, operand 0, single buffered']
    #allocation3 [shape = 's32[1]{0}', space=sflag, size = 0x4, scoped, tag = 'scoped memory for tpu_custom_call.1']
    #allocation4 [shape = 's32[1]{0}', space=sflag, size = 0x4, scoped, tag = 'scoped memory for tpu_custom_call.1']
    #allocation5 [shape = 'u8[4096]{0}', space=vmem, size = 0x1000, scoped, tag = 'output window, operand 0, single buffered']
    %6 = vsyncpa [#allocation3], 0
    %7 = vsyncpa [#allocation4], 0
    // Predicated region
    $region2: #{tpu_custom_call.1} parent=1 // pred_check
      _
    $region3: #{tpu_custom_call.1} parent=1 // pred_check_branch
      %9 = sbr.rel (0) target = $region5
    $region4: #{tpu_custom_call.1} parent=1 // pred_region
      %11 = vsyncadd [#allocation3], 0
      %s13 = sshll.u32 %s0, 4
      %s14 = int_to_ptr.hbm [resolvable:$true] %s13
      %s15 = sshll.u32 [#allocation2], 4
      %s16 = int_to_ptr.vmem [resolvable:$true] %s15
      %18 = dma.hbm_to_vmem [thread:$0]  %s14, 64, %s16, [#allocation3]
    $region5: #{tpu_custom_call.1} parent=1 // pred_fallthru
      _
    // Predicated region
    $region6: #{tpu_custom_call.1} parent=1 // pred_check
      _
    $region7: #{tpu_custom_call.1} parent=1 // pred_check_branch
      %20 = sbr.rel (0) target = $region9
    $region8: #{tpu_custom_call.1} parent=1 // pred_region
      %22 = dma.done [#allocation3], 64
    $region9: #{tpu_custom_call.1} parent=1 // pred_fallthru
      _
    %v23 = vld [vmem:[#allocation2] sm:$0xf]
    %vm24 = vcmask 1047808
    %25 = vrot.lane.b32.xlu0 %v23, 32
    %v26 = vpop.permute.xlu0 %25
    %v27 = vsel %vm24, %v26, %v23
    %28 = vrot.lane.b32.xlu0 %v27, 32
    %v29 = vpop.permute.xlu0 %28
    %v30 = vsel %vm24, %v29, %v23
    %32 = vrot.lane.b32.xlu0 %v30, 97
    %v33 = vpop.permute.xlu0 %32
    %vm35 = vcmask 257024
    %36 = vst.msk [vmem:[#allocation5] sm:$0xf] %vm35, %v33
    %v37 = vld [vmem:[#allocation2] sm:$0xf]
    %38 = vrot.lane.b32.xlu0 %v37, 32
    %v39 = vpop.permute.xlu0 %38
    %v40 = vsel %vm24, %v39, %v37
    %41 = vrot.lane.b32.xlu0 %v40, 32
    %v42 = vpop.permute.xlu0 %41
    %v43 = vsel %vm24, %v42, %v37
    %45 = vrot.lane.b32.xlu0 %v43, 127
    %v46 = vpop.permute.xlu0 %45
    %s48 = scalar_lea.vmem [#allocation5], 4
    %49 = vst.msk [vmem:[%s48] sm:$0xf] %vm35, %v46
    // Predicated region
    $region10: #{tpu_custom_call.1} parent=1 // pred_check
      _
    $region11: #{tpu_custom_call.1} parent=1 // pred_check_branch
      %51 = sbr.rel (0) target = $region13
    $region12: #{tpu_custom_call.1} parent=1 // pred_region
      %53 = vsyncadd [#allocation4], 0
      %s54 = sshll.u32 [#allocation5], 4
      %s55 = int_to_ptr.vmem [resolvable:$true] %s54
      %s56 = sshll.u32 %s1, 4
      %s57 = int_to_ptr.hbm [resolvable:$true] %s56
      %62 = dma.vmem_to_hbm [thread:$0]  %s55, 128, %s57, [#allocation4], 64, 64, 4
    $region13: #{tpu_custom_call.1} parent=1 // pred_fallthru
      _
    // Predicated region
    $region14: #{tpu_custom_call.1} parent=1 // pred_check
      _
    $region15: #{tpu_custom_call.1} parent=1 // pred_check_branch
      %64 = sbr.rel (0) target = $region17
    $region16: #{tpu_custom_call.1} parent=1 // pred_region
      %66 = dma.done [#allocation4], 128
    $region17: #{tpu_custom_call.1} parent=1 // pred_fallthru
      _
    %67 = vsyncpa [#allocation3], 1
    %68 = vsyncpa [#allocation4], 1

// kernel: tpu_custom_call.1
$region0: #{tpu_custom_call.1}
  #allocation0 [shape = 'u32[]', space=smem, size = 0x4, offset = 0x4, fixed_abs, tag = 'smem constant byte address 0x4 - core index']
  #allocation1 [shape = 'u32[72,128]{1,0:T(1,128)}', space=vmem, size = 0x9000, scoped, tag = 'internal scratch']
  #allocation2 [shape = 'f32[2,32,16]{2,1,0:T(8,128)}', space=vmem, size = 0x8000, scoped, tag = 'scratch operand']
  #allocation3 [shape = 'f32[2,64]{1,0:T(2,128)}', space=vmem, size = 0x400, scoped, tag = 'scratch operand']
  #allocation4 [shape = 'f32[2,32]{1,0:T(2,128)}', space=vmem, size = 0x400, scoped, tag = 'scratch operand']
  #allocation5 [shape = 'f32[4,32]{1,0:T(4,128)}', space=vmem, size = 0x800, scoped, tag = 'scratch operand']
  #allocation6 [shape = 'f32[4,32]{1,0:T(4,128)}', space=vmem, size = 0x800, scoped, tag = 'scratch operand']
  %s0 = inlined_call_operand.vmem [shape: f32[8,2,16], index: 0, kind: input, shape index: {}]
  %s1 = inlined_call_operand.vmem [shape: f32[2,32,16], index: 1, kind: input, shape index: {}]
  %s2 = inlined_call_operand.vmem [shape: f32[2,256], index: 2, kind: input, shape index: {}]
  %s3 = inlined_call_operand.vmem [shape: f32[64,128], index: 3, kind: input, shape index: {}]
  %s4 = inlined_call_operand.vmem [shape: f32[1,128], index: 4, kind: input, shape index: {}]
  %s5 = inlined_call_operand.vmem [shape: f32[32,76], index: 5, kind: input, shape index: {}]
  %s6 = inlined_call_operand.vmem [shape: f32[1,76], index: 6, kind: input, shape index: {}]
  %s7 = inlined_call_operand.vmem [shape: f32[48,8], index: 7, kind: input, shape index: {}]
  %s8 = inlined_call_operand.vmem [shape: f32[1,8], index: 8, kind: input, shape index: {}]
  %s9 = inlined_call_operand.hbm [shape: f32[32,64], index: 9, kind: input, shape index: {}]
  %s10 = inlined_call_operand.hbm [shape: f32[8,2,256], index: 10, kind: output, shape index: {0}]
  %s11 = inlined_call_operand.vmem [shape: f32[2,32,16], index: 11, kind: output, shape index: {1}]
  %12 = xla_tuple %s10, %s11
  %s13 = sld [smem:[#allocation0]]
  $region93: #{tpu_custom_call.1} parent=0
    _
  %s15 = ssub.s32 1, %s13
  %s16 = scalar_select 0, %s15, %s13
  $region1: #{tpu_custom_call.1} parent=0
    #allocation7 [shape = 'u8[16384]{0}', space=vmem, size = 0x4000, scoped, tag = 'input window, operand 9, single buffered']
    #allocation8 [shape = 's32[2]{0}', space=sflag, size = 0x8, scoped, tag = 'scoped memory for tpu_custom_call.1']
    #allocation9 [shape = 's32[2]{0}', space=sflag, size = 0x8, scoped, tag = 'scoped memory for tpu_custom_call.1']
    #allocation10 [shape = 'u8[4096]{0}', space=vmem, size = 0x1000, scoped, tag = 'output window, operand 0']
    %17 = vsyncpa [#allocation8], 0
    %18 = vsyncpa [#allocation9], 0
    %s19 = scalar_lea.sflag [#allocation9], 1
    %20 = vsyncpa %s19, 0
    loop: start=0, step=1, limit=10
    $region2: #{tpu_custom_call.1} parent=1 // loop_pre_header
      _
    $region3: #{tpu_custom_call.1} parent=1 // loop_header
      %s22 = sphi 0, %s26
      %p23 = scmp.ge.s32.totalorder %s22, 10
      %s32 = sphi 0, %s34
      %s35 = sphi 0, %s32
      %s36 = sphi 0, %s35
      %s52 = sphi 0, %s36
      %s56 = sphi 0, %s56
      %s58 = sphi 0, %s56
      %s59 = sphi 0, %s58
      %s73 = sphi 0, %s59
      %s77 = sphi 0, %s77
      %s79 = sphi 0, %s77
      %s80 = sphi 0, %s79
      %s94 = sphi 0, %s80
      %s98 = sphi 0, %s98
      %s100 = sphi 0, %s98
      %s101 = sphi 0, %s100
      %s115 = sphi 0, %s101
      %s119 = sphi 0, %s119
      %s121 = sphi 0, %s119
      %s122 = sphi 0, %s121
      %s136 = sphi 0, %s122
      %s140 = sphi 0, %s140
      %s142 = sphi 0, %s140
      %s143 = sphi 0, %s142
      %s157 = sphi 0, %s143
      %s161 = sphi 0, %s161
      %s163 = sphi 0, %s161
      %s164 = sphi 0, %s163
      %s178 = sphi 0, %s164
      %s182 = sphi 0, %s182
      %s184 = sphi 0, %s182
      %s185 = sphi 0, %s184
      %s199 = sphi 0, %s185
      %s203 = sphi 0, %s203
      %s205 = sphi 0, %s203
      %s206 = sphi 0, %s205
      %s220 = sphi 0, %s206
      %s224 = sphi 0, %s224
      %s226 = sphi 0, %s224
      %s227 = sphi 0, %s226
      %s241 = sphi 0, %s227
      %s247 = sphi 0, %s249
      %s250 = sphi 0, %s247
      %s251 = sphi 0, %s250
      %s267 = sphi 0, %s251
      %s271 = sphi 0, %s271
      %s273 = sphi 0, %s271
      %s274 = sphi 0, %s273
      %s288 = sphi 0, %s274
    $region4: #{tpu_custom_call.1} parent=1 // loop_header_branch
      %25 = sbr.rel (%p23) target = $region8
    $region5: #{tpu_custom_call.1} parent=1 // loop_body
      %s27 = ssub.s32 %s22, 1
      %s28 = ssub.s32 %s22, 2
      %s29 = sadd.s32 %s22, 1
      %s30 = ssub.s32 %s22, %s29
      %p31 = scmp.eq.s32.totalorder %s30, 0
      %s33 = sadd.s32 %s32, 1
      %s34 = scalar_select %p31, %s32, %s33
      %p37 = pneg %p31
      %p38 = scmp.eq.s32.totalorder %s22, 7
      %p39 = por %p37, %p38
      %p40 = scmp.ne.s32.totalorder %s32, %s35
      %p41 = scmp.eq.s32.totalorder %s22, 0
      %p42 = por %p40, %p41
      %p43 = scmp.ne.s32.totalorder %s32, %s35
      %p44 = scmp.eq.s32.totalorder %s27, 7
      %p45 = por %p43, %p44
      %p46 = scmp.ne.s32.totalorder %s35, %s36
      %p47 = scmp.eq.s32.totalorder %s27, 0
      %p48 = por %p46, %p47
      %p49 = scmp.ne.s32.totalorder %s35, %s36
      %p50 = scmp.eq.s32.totalorder %s28, 7
      %p51 = por %p49, %p50
      %p53 = scmp.ne.s32.totalorder %s36, %s52
      %p54 = scmp.eq.s32.totalorder %s28, 0
      %p55 = por %p53, %p54
      %s57 = sadd.s32 %s56, 1
      %p60 = scmp.eq.s32.totalorder %s22, 7
      %p61 = scmp.ne.s32.totalorder %s56, %s58
      %p62 = scmp.eq.s32.totalorder %s22, 0
      %p63 = por %p61, %p62
      %p64 = scmp.ne.s32.totalorder %s56, %s58
      %p65 = scmp.eq.s32.totalorder %s27, 7
      %p66 = por %p64, %p65
      %p67 = scmp.ne.s32.totalorder %s58, %s59
      %p68 = scmp.eq.s32.totalorder %s27, 0
      %p69 = por %p67, %p68
      %p70 = scmp.ne.s32.totalorder %s58, %s59
      %p71 = scmp.eq.s32.totalorder %s28, 7
      %p72 = por %p70, %p71
      %p74 = scmp.ne.s32.totalorder %s59, %s73
      %p75 = scmp.eq.s32.totalorder %s28, 0
      %p76 = por %p74, %p75
      %s78 = sadd.s32 %s77, 1
      %p81 = scmp.eq.s32.totalorder %s22, 7
      %p82 = scmp.ne.s32.totalorder %s77, %s79
      %p83 = scmp.eq.s32.totalorder %s22, 0
      %p84 = por %p82, %p83
      %p85 = scmp.ne.s32.totalorder %s77, %s79
      %p86 = scmp.eq.s32.totalorder %s27, 7
      %p87 = por %p85, %p86
      %p88 = scmp.ne.s32.totalorder %s79, %s80
      %p89 = scmp.eq.s32.totalorder %s27, 0
      %p90 = por %p88, %p89
      %p91 = scmp.ne.s32.totalorder %s79, %s80
      %p92 = scmp.eq.s32.totalorder %s28, 7
      %p93 = por %p91, %p92
      %p95 = scmp.ne.s32.totalorder %s80, %s94
      %p96 = scmp.eq.s32.totalorder %s28, 0
      %p97 = por %p95, %p96
      %s99 = sadd.s32 %s98, 1
      %p102 = scmp.eq.s32.totalorder %s22, 7
      %p103 = scmp.ne.s32.totalorder %s98, %s100
      %p104 = scmp.eq.s32.totalorder %s22, 0
      %p105 = por %p103, %p104
      %p106 = scmp.ne.s32.totalorder %s98, %s100
      %p107 = scmp.eq.s32.totalorder %s27, 7
      %p108 = por %p106, %p107
      %p109 = scmp.ne.s32.totalorder %s100, %s101
      %p110 = scmp.eq.s32.totalorder %s27, 0
      %p111 = por %p109, %p110
      %p112 = scmp.ne.s32.totalorder %s100, %s101
      %p113 = scmp.eq.s32.totalorder %s28, 7
      %p114 = por %p112, %p113
      %p116 = scmp.ne.s32.totalorder %s101, %s115
      %p117 = scmp.eq.s32.totalorder %s28, 0
      %p118 = por %p116, %p117
      %s120 = sadd.s32 %s119, 1
      %p123 = scmp.eq.s32.totalorder %s22, 7
      %p124 = scmp.ne.s32.totalorder %s119, %s121
      %p125 = scmp.eq.s32.totalorder %s22, 0
      %p126 = por %p124, %p125
      %p127 = scmp.ne.s32.totalorder %s119, %s121
      %p128 = scmp.eq.s32.totalorder %s27, 7
      %p129 = por %p127, %p128
      %p130 = scmp.ne.s32.totalorder %s121, %s122
      %p131 = scmp.eq.s32.totalorder %s27, 0
      %p132 = por %p130, %p131
      %p133 = scmp.ne.s32.totalorder %s121, %s122
      %p134 = scmp.eq.s32.totalorder %s28, 7
      %p135 = por %p133, %p134
      %p137 = scmp.ne.s32.totalorder %s122, %s136
      %p138 = scmp.eq.s32.totalorder %s28, 0
      %p139 = por %p137, %p138
      %s141 = sadd.s32 %s140, 1
      %p144 = scmp.eq.s32.totalorder %s22, 7
      %p145 = scmp.ne.s32.totalorder %s140, %s142
      %p146 = scmp.eq.s32.totalorder %s22, 0
      %p147 = por %p145, %p146
      %p148 = scmp.ne.s32.totalorder %s140, %s142
      %p149 = scmp.eq.s32.totalorder %s27, 7
      %p150 = por %p148, %p149
      %p151 = scmp.ne.s32.totalorder %s142, %s143
      %p152 = scmp.eq.s32.totalorder %s27, 0
      %p153 = por %p151, %p152
      %p154 = scmp.ne.s32.totalorder %s142, %s143
      %p155 = scmp.eq.s32.totalorder %s28, 7
      %p156 = por %p154, %p155
      %p158 = scmp.ne.s32.totalorder %s143, %s157
      %p159 = scmp.eq.s32.totalorder %s28, 0
      %p160 = por %p158, %p159
      %s162 = sadd.s32 %s161, 1
      %p165 = scmp.eq.s32.totalorder %s22, 7
      %p166 = scmp.ne.s32.totalorder %s161, %s163
      %p167 = scmp.eq.s32.totalorder %s22, 0
      %p168 = por %p166, %p167
      %p169 = scmp.ne.s32.totalorder %s161, %s163
      %p170 = scmp.eq.s32.totalorder %s27, 7
      %p171 = por %p169, %p170
      %p172 = scmp.ne.s32.totalorder %s163, %s164
      %p173 = scmp.eq.s32.totalorder %s27, 0
      %p174 = por %p172, %p173
      %p175 = scmp.ne.s32.totalorder %s163, %s164
      %p176 = scmp.eq.s32.totalorder %s28, 7
      %p177 = por %p175, %p176
      %p179 = scmp.ne.s32.totalorder %s164, %s178
      %p180 = scmp.eq.s32.totalorder %s28, 0
      %p181 = por %p179, %p180
      %s183 = sadd.s32 %s182, 1
      %p186 = scmp.eq.s32.totalorder %s22, 7
      %p187 = scmp.ne.s32.totalorder %s182, %s184
      %p188 = scmp.eq.s32.totalorder %s22, 0
      %p189 = por %p187, %p188
      %p190 = scmp.ne.s32.totalorder %s182, %s184
      %p191 = scmp.eq.s32.totalorder %s27, 7
      %p192 = por %p190, %p191
      %p193 = scmp.ne.s32.totalorder %s184, %s185
      %p194 = scmp.eq.s32.totalorder %s27, 0
      %p195 = por %p193, %p194
      %p196 = scmp.ne.s32.totalorder %s184, %s185
      %p197 = scmp.eq.s32.totalorder %s28, 7
      %p198 = por %p196, %p197
      %p200 = scmp.ne.s32.totalorder %s185, %s199
      %p201 = scmp.eq.s32.totalorder %s28, 0
      %p202 = por %p200, %p201
      %s204 = sadd.s32 %s203, 1
      %p207 = scmp.eq.s32.totalorder %s22, 7
      %p208 = scmp.ne.s32.totalorder %s203, %s205
      %p209 = scmp.eq.s32.totalorder %s22, 0
      %p210 = por %p208, %p209
      %p211 = scmp.ne.s32.totalorder %s203, %s205
      %p212 = scmp.eq.s32.totalorder %s27, 7
      %p213 = por %p211, %p212
      %p214 = scmp.ne.s32.totalorder %s205, %s206
      %p215 = scmp.eq.s32.totalorder %s27, 0
      %p216 = por %p214, %p215
      %p217 = scmp.ne.s32.totalorder %s205, %s206
      %p218 = scmp.eq.s32.totalorder %s28, 7
      %p219 = por %p217, %p218
      %p221 = scmp.ne.s32.totalorder %s206, %s220
      %p222 = scmp.eq.s32.totalorder %s28, 0
      %p223 = por %p221, %p222
      %s225 = sadd.s32 %s224, 1
      %p228 = scmp.eq.s32.totalorder %s22, 7
      %p229 = scmp.ne.s32.totalorder %s224, %s226
      %p230 = scmp.eq.s32.totalorder %s22, 0
      %p231 = por %p229, %p230
      %p232 = scmp.ne.s32.totalorder %s224, %s226
      %p233 = scmp.eq.s32.totalorder %s27, 7
      %p234 = por %p232, %p233
      %p235 = scmp.ne.s32.totalorder %s226, %s227
      %p236 = scmp.eq.s32.totalorder %s27, 0
      %p237 = por %p235, %p236
      %p238 = scmp.ne.s32.totalorder %s226, %s227
      %p239 = scmp.eq.s32.totalorder %s28, 7
      %p240 = por %p238, %p239
      %p242 = scmp.ne.s32.totalorder %s227, %s241
      %p243 = scmp.eq.s32.totalorder %s28, 0
      %p244 = por %p242, %p243
      %s245 = ssub.s32 %s22, %s29
      %p246 = scmp.eq.s32.totalorder %s245, 0
      %s248 = sadd.s32 %s247, 1
      %s249 = scalar_select %p246, %s247, %s248
      %p252 = pneg %p246
      %p253 = scmp.eq.s32.totalorder %s22, 7
      %p254 = por %p252, %p253
      %p255 = scmp.ne.s32.totalorder %s247, %s250
      %p256 = scmp.eq.s32.totalorder %s22, 0
      %p257 = por %p255, %p256
      %p258 = scmp.ne.s32.totalorder %s247, %s250
      %p259 = scmp.eq.s32.totalorder %s27, 7
      %p260 = por %p258, %p259
      %p261 = scmp.ne.s32.totalorder %s250, %s251
      %p262 = scmp.eq.s32.totalorder %s27, 0
      %p263 = por %p261, %p262
      %p264 = scmp.ne.s32.totalorder %s250, %s251
      %p265 = scmp.eq.s32.totalorder %s28, 7
      %p266 = por %p264, %p265
      %p268 = scmp.ne.s32.totalorder %s251, %s267
      %p269 = scmp.eq.s32.totalorder %s28, 0
      %p270 = por %p268, %p269
      %s272 = sadd.s32 %s271, 1
      %p275 = scmp.eq.s32.totalorder %s22, 7
      %p276 = scmp.ne.s32.totalorder %s271, %s273
      %p277 = scmp.eq.s32.totalorder %s22, 0
      %p278 = por %p276, %p277
      %p279 = scmp.ne.s32.totalorder %s271, %s273
      %p280 = scmp.eq.s32.totalorder %s27, 7
      %p281 = por %p279, %p280
      %p282 = scmp.ne.s32.totalorder %s273, %s274
      %p283 = scmp.eq.s32.totalorder %s27, 0
      %p284 = por %p282, %p283
      %p285 = scmp.ne.s32.totalorder %s273, %s274
      %p286 = scmp.eq.s32.totalorder %s28, 7
      %p287 = por %p285, %p286
      %p289 = scmp.ne.s32.totalorder %s274, %s288
      %p290 = scmp.eq.s32.totalorder %s28, 0
      %p291 = por %p289, %p290
      %p292 = scmp.le.s32.totalorder 1, %s22
      %p293 = scmp.lt.s32.totalorder %s22, 9
      %p294 = pnand %p292, %p293
      %p295 = pneg %p294
      // Predicated region
      $region9: #{tpu_custom_call.1} parent=5 // pred_check
        _
      $region10: #{tpu_custom_call.1} parent=5 // pred_check_branch
        %297 = sbr.rel (%p294) target = $region12
      $region11: #{tpu_custom_call.1} parent=5 // pred_region
        %s298 = ssub.s32 %s22, 1
        // Predicated region
        $region13: #{tpu_custom_call.1} parent=11 // pred_check
          %p299 = pneg %p69
        $region14: #{tpu_custom_call.1} parent=11 // pred_check_branch
          %301 = sbr.rel (%p299) target = $region16
        $region15: #{tpu_custom_call.1} parent=11 // pred_region
          _
        $region16: #{tpu_custom_call.1} parent=11 // pred_fallthru
          _
        // Predicated region
        $region17: #{tpu_custom_call.1} parent=11 // pred_check
          %p302 = pneg %p90
        $region18: #{tpu_custom_call.1} parent=11 // pred_check_branch
          %304 = sbr.rel (%p302) target = $region20
        $region19: #{tpu_custom_call.1} parent=11 // pred_region
          _
        $region20: #{tpu_custom_call.1} parent=11 // pred_fallthru
          _
        // Predicated region
        $region21: #{tpu_custom_call.1} parent=11 // pred_check
          %p305 = pneg %p111
        $region22: #{tpu_custom_call.1} parent=11 // pred_check_branch
          %307 = sbr.rel (%p305) target = $region24
        $region23: #{tpu_custom_call.1} parent=11 // pred_region
          _
        $region24: #{tpu_custom_call.1} parent=11 // pred_fallthru
          _
        // Predicated region
        $region25: #{tpu_custom_call.1} parent=11 // pred_check
          %p308 = pneg %p132
        $region26: #{tpu_custom_call.1} parent=11 // pred_check_branch
          %310 = sbr.rel (%p308) target = $region28
        $region27: #{tpu_custom_call.1} parent=11 // pred_region
          _
        $region28: #{tpu_custom_call.1} parent=11 // pred_fallthru
          _
        // Predicated region
        $region29: #{tpu_custom_call.1} parent=11 // pred_check
          %p311 = pneg %p153
        $region30: #{tpu_custom_call.1} parent=11 // pred_check_branch
          %313 = sbr.rel (%p311) target = $region32
        $region31: #{tpu_custom_call.1} parent=11 // pred_region
          _
        $region32: #{tpu_custom_call.1} parent=11 // pred_fallthru
          _
        // Predicated region
        $region33: #{tpu_custom_call.1} parent=11 // pred_check
          %p314 = pneg %p174
        $region34: #{tpu_custom_call.1} parent=11 // pred_check_branch
          %316 = sbr.rel (%p314) target = $region36
        $region35: #{tpu_custom_call.1} parent=11 // pred_region
          _
        $region36: #{tpu_custom_call.1} parent=11 // pred_fallthru
          _
        // Predicated region
        $region37: #{tpu_custom_call.1} parent=11 // pred_check
          %p317 = pneg %p195
        $region38: #{tpu_custom_call.1} parent=11 // pred_check_branch
          %319 = sbr.rel (%p317) target = $region40
        $region39: #{tpu_custom_call.1} parent=11 // pred_region
          _
        $region40: #{tpu_custom_call.1} parent=11 // pred_fallthru
          _
        // Predicated region
        $region41: #{tpu_custom_call.1} parent=11 // pred_check
          %p320 = pneg %p216
        $region42: #{tpu_custom_call.1} parent=11 // pred_check_branch
          %322 = sbr.rel (%p320) target = $region44
        $region43: #{tpu_custom_call.1} parent=11 // pred_region
          _
        $region44: #{tpu_custom_call.1} parent=11 // pred_fallthru
          _
        // Predicated region
        $region45: #{tpu_custom_call.1} parent=11 // pred_check
          %p323 = pneg %p237
        $region46: #{tpu_custom_call.1} parent=11 // pred_check_branch
          %325 = sbr.rel (%p323) target = $region48
        $region47: #{tpu_custom_call.1} parent=11 // pred_region
          %327 = vsyncadd [#allocation8], 0
          %s328 = sshll.u32 %s9, 4
          %s329 = int_to_ptr.hbm [resolvable:$true] %s328
          %s330 = sshll.u32 [#allocation7], 4
          %s331 = int_to_ptr.vmem [resolvable:$true] %s330
          %336 = dma.hbm_to_vmem [thread:$0]  %s329, 512, %s331, [#allocation8], 128, 128, 8
        $region48: #{tpu_custom_call.1} parent=11 // pred_fallthru
          _
      $region12: #{tpu_custom_call.1} parent=5 // pred_fallthru
        _
      %p337 = scmp.lt.s32.totalorder %s22, 8
      // Predicated region
      $region49: #{tpu_custom_call.1} parent=5 // pred_check
        %p338 = pneg %p337
      $region50: #{tpu_custom_call.1} parent=5 // pred_check_branch
        %340 = sbr.rel (%p338) target = $region52
      $region51: #{tpu_custom_call.1} parent=5 // pred_region
        // Predicated region
        $region53: #{tpu_custom_call.1} parent=51 // pred_check
          %p341 = pneg %p42
        $region54: #{tpu_custom_call.1} parent=51 // pred_check_branch
          %343 = sbr.rel (%p341) target = $region56
        $region55: #{tpu_custom_call.1} parent=51 // pred_region
          %p344 = scmp.lt.s32.totalorder %s22, 7
          %s345 = scalar_select %p344, %s22, 7
          %s346 = smul.addr %s345, 2
          %s347 = scalar_lea.vmem %s0, %s346
        $region56: #{tpu_custom_call.1} parent=51 // pred_fallthru
          _
      $region52: #{tpu_custom_call.1} parent=5 // pred_fallthru
        _
      %p348 = scmp.le.s32.totalorder 1, %s22
      %p349 = scmp.lt.s32.totalorder %s22, 9
      %p350 = pnand %p348, %p349
      %p351 = pneg %p350
      // Predicated region
      $region57: #{tpu_custom_call.1} parent=5 // pred_check
        _
      $region58: #{tpu_custom_call.1} parent=5 // pred_check_branch
        %353 = sbr.rel (%p350) target = $region60
      $region59: #{tpu_custom_call.1} parent=5 // pred_region
        %s354 = ssub.s32 %s22, 1
        // Predicated region
        $region61: #{tpu_custom_call.1} parent=59 // pred_check
          %p355 = pneg %p237
        $region62: #{tpu_custom_call.1} parent=59 // pred_check_branch
          %357 = sbr.rel (%p355) target = $region64
        $region63: #{tpu_custom_call.1} parent=59 // pred_region
          %359 = dma.done [#allocation8], 512
        $region64: #{tpu_custom_call.1} parent=59 // pred_fallthru
          _
        %p360 = scmp.lt.s32.totalorder %s27, 7
        %s361 = scalar_select %p360, %s27, 7
        %s362 = smul.addr %s361, 2
        %s363 = scalar_lea.vmem %s0, %s362
        %p364 = pneg %p48
        %p365 = pneg %p45
        %p366 = pneg %p69
        %p367 = pneg %p66
        %p368 = pneg %p90
        %p369 = pneg %p87
        %p370 = pneg %p111
        %p371 = pneg %p108
        %p372 = pneg %p132
        %p373 = pneg %p129
        %p374 = pneg %p153
        %p375 = pneg %p150
        %p376 = pneg %p174
        %p377 = pneg %p171
        %p378 = pneg %p195
        %p379 = pneg %p192
        %p380 = pneg %p216
        %p381 = pneg %p213
        %p382 = pneg %p237
        %p383 = pneg %p234
        %p384 = pneg %p263
        %p385 = pneg %p260
        %s386 = sand.u32 %s250, 1
        %s387 = scalar_lea.sflag [#allocation9], %s386
        %s388 = sand.u32 %s250, 1
        %s389 = smul.addr %s388, 4
        %s390 = scalar_lea.vmem [#allocation10], %s389
        %p391 = pneg %p284
        %p392 = pneg %p281
        %p393 = scmp.lt.s32.totalorder %s27, 7
        %s394 = scalar_select %p393, %s27, 7
        %s395 = smul.addr %s394, 2
        %s396 = scalar_lea.vmem %s0, %s395
        %p397 = scmp.eq.s32.totalorder %s27, 0
        // Predicated region
        $region65: #{tpu_custom_call.1} parent=59 // pred_check
          %p398 = pneg %p397
        $region66: #{tpu_custom_call.1} parent=59 // pred_check_branch
          %400 = sbr.rel (%p398) target = $region68
        $region67: #{tpu_custom_call.1} parent=59 // pred_region
          %v401 = vld [vmem:[%s1] sm:$0xff]
          %v402 = vld [vmem:[%s1 + $0x8] sm:$0xff]
          %v403 = vld [vmem:[%s1 + $0x10] sm:$0xff]
          %v404 = vld [vmem:[%s1 + $0x18] sm:$0xff]
          %v405 = vld [vmem:[%s1 + $0x20] sm:$0xff]
          %v406 = vld [vmem:[%s1 + $0x28] sm:$0xff]
          %v407 = vld [vmem:[%s1 + $0x30] sm:$0xff]
          %v408 = vld [vmem:[%s1 + $0x38] sm:$0xff]
          %vm409 = vcmask 130048
          %410 = vst.msk [vmem:[#allocation2] sm:$0xff] %vm409, %v401
          %411 = vst.msk [vmem:[#allocation2 + $0x8] sm:$0xff] %vm409, %v402
          %412 = vst.msk [vmem:[#allocation2 + $0x10] sm:$0xff] %vm409, %v403
          %413 = vst.msk [vmem:[#allocation2 + $0x18] sm:$0xff] %vm409, %v404
          %414 = vst.msk [vmem:[#allocation2 + $0x20] sm:$0xff] %vm409, %v405
          %415 = vst.msk [vmem:[#allocation2 + $0x28] sm:$0xff] %vm409, %v406
          %416 = vst.msk [vmem:[#allocation2 + $0x30] sm:$0xff] %vm409, %v407
          %417 = vst.msk [vmem:[#allocation2 + $0x38] sm:$0xff] %vm409, %v408
          %vm418 = vcmask 517120
          %419 = vst.msk [vmem:[#allocation3] sm:$0x3] %vm418, 0.0
          %v420 = vld [vmem:[%s2 + $0x2] sm:$0x3]
          %422 = vst [vmem:[#allocation1] ss:$4 sm:$0xff] %v420
          %v423 = vld.sshfl [vmem:[#allocation1] sm:$0xff pattern:$0x73625140]
          %424 = vrot.lane.b32.xlu0 %v423, 112
          %v425 = vpop.permute.xlu0 %424
          %vm427 = vcmask 255104
          %428 = vst.msk [vmem:[#allocation3] sm:$0x3] %vm427, %v425
          %v429 = vld [vmem:[%s2] sm:$0x3]
          %vm430 = vcmask 517376
          %431 = vst.msk [vmem:[#allocation3] sm:$0x3] %vm430, %v429
          %v432 = vld [vmem:[%s2] sm:$0x3]
          %434 = vst [vmem:[#allocation1] ss:$4 sm:$0xff] %v432
          %v435 = vld.sshfl [vmem:[#allocation1] sm:$0xff pattern:$0x73625140]
          %436 = vrot.lane.b32.xlu0 %v435, 64
          %v437 = vpop.permute.xlu0 %436
          %vm439 = vcmask 254976
          %440 = vst.msk [vmem:[#allocation4] sm:$0x3] %vm439, %v437
          %v441 = vld [vmem:[%s2] sm:$0x3]
          %443 = vst [vmem:[#allocation1] ss:$4 sm:$0xff] %v441
          %v444 = vld.sshfl [vmem:[#allocation1] sm:$0xff pattern:$0x73625140]
          %445 = vrot.lane.b32.xlu0 %v444, 32
          %v446 = vpop.permute.xlu0 %445
          %448 = vst.msk [vmem:[#allocation5] sm:$0x3] %vm439, %v446
          %v449 = vld [vmem:[%s2 + $0x2] sm:$0x3]
          %450 = vst.msk [vmem:[#allocation5 + $0x2] sm:$0x3] %vm439, %v449
          %vm451 = vcmask 257024
          %452 = vst.msk [vmem:[#allocation6] sm:$0xf] %vm451, 0.0
        $region68: #{tpu_custom_call.1} parent=59 // pred_fallthru
          _
        %v453 = vld [vmem:[%s396] sm:$0x3]
        %vm454 = vcmask 123904
        %455 = vst.msk [vmem:[#allocation3] sm:$0x3] %vm454, %v453
        %v456 = vld [vmem:[#allocation3] sm:$0x3]
        %v457 = vld [vmem:[%s3] sm:$0xff]
        %v458 = vld [vmem:[%s3 + $0x8] sm:$0xff]
        %v459 = vld [vmem:[%s3 + $0x10] sm:$0xff]
        %v460 = vld [vmem:[%s3 + $0x18] sm:$0xff]
        %v461 = vld [vmem:[%s3 + $0x20] sm:$0xff]
        %v462 = vld [vmem:[%s3 + $0x28] sm:$0xff]
        %v463 = vld [vmem:[%s3 + $0x30] sm:$0xff]
        %v464 = vld [vmem:[%s3 + $0x38] sm:$0xff]
        %v465 = vld [vmem:[%s4] sm:$0x1]
        %v467 = vperm.slane %v465, 0
        %vm469 = vcmask 523264
        %v471 = vsel %vm469, %v456, 0
        %473 = vmatpush.msra.mxu0 0.0
        %474 = vmatpush.msra.mxu0 0.0
        %475 = vmatpush.msra.mxu0 0.0
        %476 = vmatpush.msra.mxu0 0.0
        %477 = vmatpush.msra.mxu0 0.0
        %478 = vmatpush.msra.mxu0 0.0
        %479 = vmatpush.msra.mxu0 0.0
        %480 = vmatpush.msra.mxu0 0.0
        %481 = vmatpush.msra.mxu0 %v464
        %482 = vmatpush.msra.mxu0 %v463
        %483 = vmatpush.msra.mxu0 %v462
        %484 = vmatpush.msra.mxu0 %v461
        %485 = vmatpush.msra.mxu0 %v460
        %486 = vmatpush.msra.mxu0 %v459
        %487 = vmatpush.msra.mxu0 %v458
        %488 = vmatpush.msra.mxu0 %v457
        %489 = vmatmul.f32.gmra.mxu0 %v471
        %v490 = vpop.f32.mrf.mxu0
        %v491 = vadd.f32 %v467, %v490
        %492 = vdwg.mxu0
        %v493 = vxor.u32 %v491, 2147483648
        %v494 = vmul.f32 %v493, 1.442695
        %v495 = vpow.pop %v494
        %v496 = vadd.f32 %v495, 1.0
        %v497 = vrcp.pop %v496
        %v498 = vmul.f32 %v496, %v497
        %v499 = vsub.f32 1.0, %v498
        %v500 = vmul.f32 %v497, %v499
        %v501 = vadd.f32 %v497, %v500
        %vm502 = vweird.f32 %v496
        %vm503 = vweird.f32 %v497
        %vm504 = vmor %vm502, %vm503
        %v505 = vsel %vm504, %v497, %v501
        %v506 = vand.u32 2147483647, %v496
        %vm507 = vcmp.eq.f32.partialorder %v506, 8.507059e+37
        %v508 = vand.u32 %v496, 2147483648
        %v509 = vor.u32 1.1754944e-38, %v508
        %v510 = vsel %vm507, %v509, %v505
        %v511 = vmul.f32 1.0, %v510
        %v512 = vtanh.pop %v491
        %v513 = vld [vmem:[#allocation4] sm:$0x3]
        %515 = vrot.lane.b32.xlu0 %v513, 32
        %v516 = vpop.permute.xlu0 %515
        %v518 = vmul.f32 %v511, %v516
        %520 = vrot.lane.b32.xlu0 %v512, 64
        %v521 = vpop.permute.xlu0 %520
        %v523 = vmul.f32 %v511, %v521
        %525 = vrot.lane.b32.xlu0 %v523, 32
        %v526 = vpop.permute.xlu0 %525
        %v528 = vadd.f32 %v518, %v526
        %v529 = vtanh.pop %v528
        %531 = vrot.lane.b32.xlu0 %v529, 64
        %v532 = vpop.permute.xlu0 %531
        %v534 = vmul.f32 %v511, %v532
        %536 = vrot.lane.b32.xlu0 %v528, 96
        %v537 = vpop.permute.xlu0 %536
        %vm539 = vcmask 254976
        %540 = vst.msk [vmem:[#allocation4] sm:$0x3] %vm539, %v537
        %542 = vrot.lane.b32.xlu0 %v534, 64
        %v543 = vpop.permute.xlu0 %542
        %vm545 = vcmask 517376
        %546 = vst.msk [vmem:[#allocation3] sm:$0x3] %vm545, %v543
        %v547 = vld [vmem:[%s5] sm:$0xff]
        %v548 = vld [vmem:[%s5 + $0x8] sm:$0xff]
        %v549 = vld [vmem:[%s5 + $0x10] sm:$0xff]
        %v550 = vld [vmem:[%s5 + $0x18] sm:$0xff]
        %v551 = vld [vmem:[%s6] sm:$0x1]
        %v553 = vperm.slane %v551, 0
        %555 = vrot.lane.b32.xlu0 %v534, 32
        %v556 = vpop.permute.xlu0 %555
        %vm557 = vcmask 261120
        %v558 = vsel %vm557, %v556, 0
        %560 = vmatpush.msra.mxu0 0.0
        %561 = vmatpush.msra.mxu0 0.0
        %562 = vmatpush.msra.mxu0 0.0
        %563 = vmatpush.msra.mxu0 0.0
        %564 = vmatpush.msra.mxu0 0.0
        %565 = vmatpush.msra.mxu0 0.0
        %566 = vmatpush.msra.mxu0 0.0
        %567 = vmatpush.msra.mxu0 0.0
        %568 = vmatpush.msra.mxu0 0.0
        %569 = vmatpush.msra.mxu0 0.0
        %570 = vmatpush.msra.mxu0 0.0
        %571 = vmatpush.msra.mxu0 0.0
        %572 = vmatpush.msra.mxu0 %v550
        %573 = vmatpush.msra.mxu0 %v549
        %574 = vmatpush.msra.mxu0 %v548
        %575 = vmatpush.msra.mxu0 %v547
        %576 = vmatmul.f32.gmra.mxu0 %v558
        %v577 = vpop.f32.mrf.mxu0
        %v578 = vadd.f32 %v553, %v577
        %579 = vdwg.mxu0
        %vm580 = vcmask 173056
        %581 = vst.msk [vmem:[#allocation6] sm:$0x3] %vm580, %v578
        %583 = vrot.lane.b32.xlu0 %v578, 106
        %v584 = vpop.permute.xlu0 %583
        %586 = vst.msk [vmem:[#allocation6 + $0x2] sm:$0x3] %vm580, %v584
        %v587 = vld [vmem:[#allocation6] sm:$0xf]
        %v588 = vadd.f32 %v587, 1e-08
        %v589 = vmin.f32 %v587, 20.0
        %vm590 = vcmp.gt.f32.partialorder %v587, 20.0
        %v591 = vmul.f32 %v589, 1.442695
        %v592 = vpow.pop %v591
        %v593 = vadd.f32 %v592, 1.0
        %v594 = vlog2.pop %v593
        %v595 = vmul.f32 %v594, 0.6931472
        %v596 = vsel %vm590, %v587, %v595
        %v597 = vxor.u32 %v587, 2147483648
        %v598 = vmul.f32 %v597, 1.442695
        %v599 = vpow.pop %v598
        %v600 = vadd.f32 %v599, 1.0
        %v601 = vrcp.pop %v600
        %v602 = vmul.f32 %v600, %v601
        %v603 = vsub.f32 1.0, %v602
        %v604 = vmul.f32 %v601, %v603
        %v605 = vadd.f32 %v601, %v604
        %vm606 = vweird.f32 %v600
        %vm607 = vweird.f32 %v601
        %vm608 = vmor %vm606, %vm607
        %v609 = vsel %vm608, %v601, %v605
        %v610 = vand.u32 2147483647, %v600
        %vm611 = vcmp.eq.f32.partialorder %v610, 8.507059e+37
        %v612 = vand.u32 %v600, 2147483648
        %v613 = vor.u32 1.1754944e-38, %v612
        %v614 = vsel %vm611, %v613, %v609
        %v615 = vmul.f32 1.0, %v614
        %vm616 = vcmask 167056
        %v617 = vsel %vm616, %v587, -inf
        %618 = vmax.xlane.f32.xlu0 %v617
        %v619 = vpop.xlane.xlu0 %618
        %v620 = vsub.f32 %v587, %v619
        %v621 = vmul.f32 %v620, 1.442695
        %v622 = vpow.pop %v621
        %624 = vrot.lane.b32.xlu0 %v622, 110
        %v625 = vpop.permute.xlu0 %624
        %vm627 = vcmask 19456
        %v628 = vsel %vm627, %v625, 0.0
        %629 = vadd.xlane.f32.xlu0 %v628
        %v630 = vpop.xlane.xlu0 %629
        %v631 = vrcp.pop %v630
        %v632 = vmul.f32 %v630, %v631
        %v633 = vsub.f32 1.0, %v632
        %v634 = vmul.f32 %v631, %v633
        %v635 = vadd.f32 %v631, %v634
        %vm636 = vweird.f32 %v630
        %vm637 = vweird.f32 %v631
        %vm638 = vmor %vm636, %vm637
        %v639 = vsel %vm638, %v631, %v635
        %v640 = vand.u32 2147483647, %v630
        %vm641 = vcmp.eq.f32.partialorder %v640, 8.507059e+37
        %v642 = vand.u32 %v630, 2147483648
        %v643 = vor.u32 1.1754944e-38, %v642
        %v644 = vsel %vm641, %v643, %v639
        %v645 = vmul.f32 %v622, %v644
        %v646 = vadd.f32 %v596, 1.0
        %v647 = vld [vmem:[#allocation2] sm:$0xff]
        %v648 = vld [vmem:[#allocation2 + $0x8] sm:$0xff]
        %v649 = vld [vmem:[#allocation2 + $0x10] sm:$0xff]
        %v650 = vld [vmem:[#allocation2 + $0x18] sm:$0xff]
        %v651 = vld [vmem:[#allocation2 + $0x20] sm:$0xff]
        %v652 = vld [vmem:[#allocation2 + $0x28] sm:$0xff]
        %v653 = vld [vmem:[#allocation2 + $0x30] sm:$0xff]
        %v654 = vld [vmem:[#allocation2 + $0x38] sm:$0xff]
        %v655 = vadd.f32 %v647, 1e-08
        %v656 = vadd.f32 %v648, 1e-08
        %v657 = vadd.f32 %v649, 1e-08
        %v658 = vadd.f32 %v650, 1e-08
        %v659 = vadd.f32 %v651, 1e-08
        %v660 = vadd.f32 %v652, 1e-08
        %v661 = vadd.f32 %v653, 1e-08
        %v662 = vadd.f32 %v654, 1e-08
        %v664 = vrot.slane %v588, 1
        %v665 = vrot.slane %v588, 2
        %v666 = vrot.slane %v588, 3
        %v667 = vperm.slane %v588, 0
        %v668 = vperm.slane %v664, 0
        %v669 = vperm.slane %v665, 0
        %v670 = vperm.slane %v666, 0
        %v675 = vmul.f32 %v655, %v667
        %v676 = vmul.f32 %v656, %v667
        %v677 = vmul.f32 %v657, %v667
        %v678 = vmul.f32 %v658, %v667
        %v679 = vmul.f32 %v659, %v668
        %v680 = vmul.f32 %v660, %v668
        %v681 = vmul.f32 %v661, %v668
        %v682 = vmul.f32 %v662, %v668
        %v683 = vmul.f32 %v655, %v669
        %v684 = vmul.f32 %v656, %v669
        %v685 = vmul.f32 %v657, %v669
        %v686 = vmul.f32 %v658, %v669
        %v687 = vmul.f32 %v659, %v670
        %v688 = vmul.f32 %v660, %v670
        %v689 = vmul.f32 %v661, %v670
        %v690 = vmul.f32 %v662, %v670
        %vm691 = vcmask 130048
        %v692 = vsel %vm691, %v675, 0.0
        %693 = vadd.xlane.f32.xlu0 %v692
        %v694 = vpop.xlane.xlu0 %693
        %v695 = vsel %vm691, %v676, 0.0
        %696 = vadd.xlane.f32.xlu0 %v695
        %v697 = vpop.xlane.xlu0 %696
        %v698 = vsel %vm691, %v677, 0.0
        %699 = vadd.xlane.f32.xlu0 %v698
        %v700 = vpop.xlane.xlu0 %699
        %v701 = vsel %vm691, %v678, 0.0
        %702 = vadd.xlane.f32.xlu0 %v701
        %v703 = vpop.xlane.xlu0 %702
        %v704 = vsel %vm691, %v679, 0.0
        %705 = vadd.xlane.f32.xlu0 %v704
        %v706 = vpop.xlane.xlu0 %705
        %v707 = vsel %vm691, %v680, 0.0
        %708 = vadd.xlane.f32.xlu0 %v707
        %v709 = vpop.xlane.xlu0 %708
        %v710 = vsel %vm691, %v681, 0.0
        %711 = vadd.xlane.f32.xlu0 %v710
        %v712 = vpop.xlane.xlu0 %711
        %v713 = vsel %vm691, %v682, 0.0
        %714 = vadd.xlane.f32.xlu0 %v713
        %v715 = vpop.xlane.xlu0 %714
        %v716 = vsel %vm691, %v683, 0.0
        %717 = vadd.xlane.f32.xlu0 %v716
        %v718 = vpop.xlane.xlu0 %717
        %v719 = vsel %vm691, %v684, 0.0
        %720 = vadd.xlane.f32.xlu0 %v719
        %v721 = vpop.xlane.xlu0 %720
        %v722 = vsel %vm691, %v685, 0.0
        %723 = vadd.xlane.f32.xlu0 %v722
        %v724 = vpop.xlane.xlu0 %723
        %v725 = vsel %vm691, %v686, 0.0
        %726 = vadd.xlane.f32.xlu0 %v725
        %v727 = vpop.xlane.xlu0 %726
        %v728 = vsel %vm691, %v687, 0.0
        %729 = vadd.xlane.f32.xlu0 %v728
        %v730 = vpop.xlane.xlu0 %729
        %v731 = vsel %vm691, %v688, 0.0
        %732 = vadd.xlane.f32.xlu0 %v731
        %v733 = vpop.xlane.xlu0 %732
        %v734 = vsel %vm691, %v689, 0.0
        %735 = vadd.xlane.f32.xlu0 %v734
        %v736 = vpop.xlane.xlu0 %735
        %v737 = vsel %vm691, %v690, 0.0
        %738 = vadd.xlane.f32.xlu0 %v737
        %v739 = vpop.xlane.xlu0 %738
        %v740 = vmul.f32 %v655, %v655
        %v741 = vmul.f32 %v656, %v656
        %v742 = vmul.f32 %v657, %v657
        %v743 = vmul.f32 %v658, %v658
        %v744 = vmul.f32 %v659, %v659
        %v745 = vmul.f32 %v660, %v660
        %v746 = vmul.f32 %v661, %v661
        %v747 = vmul.f32 %v662, %v662
        %v748 = vsel %vm691, %v740, 0.0
        %749 = vadd.xlane.f32.xlu0 %v748
        %v750 = vpop.xlane.xlu0 %749
        %v751 = vsel %vm691, %v741, 0.0
        %752 = vadd.xlane.f32.xlu0 %v751
        %v753 = vpop.xlane.xlu0 %752
        %v754 = vsel %vm691, %v742, 0.0
        %755 = vadd.xlane.f32.xlu0 %v754
        %v756 = vpop.xlane.xlu0 %755
        %v757 = vsel %vm691, %v743, 0.0
        %758 = vadd.xlane.f32.xlu0 %v757
        %v759 = vpop.xlane.xlu0 %758
        %v760 = vsel %vm691, %v744, 0.0
        %761 = vadd.xlane.f32.xlu0 %v760
        %v762 = vpop.xlane.xlu0 %761
        %v763 = vsel %vm691, %v745, 0.0
        %764 = vadd.xlane.f32.xlu0 %v763
        %v765 = vpop.xlane.xlu0 %764
        %v766 = vsel %vm691, %v746, 0.0
        %767 = vadd.xlane.f32.xlu0 %v766
        %v768 = vpop.xlane.xlu0 %767
        %v769 = vsel %vm691, %v747, 0.0
        %770 = vadd.xlane.f32.xlu0 %v769
        %v771 = vpop.xlane.xlu0 %770
        %v772 = vrsqrt.pop %v750
        %v773 = vmul.f32 %v772, %v750
        %v774 = vmul.f32 %v773, %v772
        %v775 = vmul.f32 0.5, %v774
        %v776 = vsub.f32 1.5, %v775
        %v777 = vmul.f32 %v772, %v776
        %v778 = vmul.f32 %v750, %v777
        %vm779 = vcmp.eq.f32.partialorder %v750, inf
        %v780 = vsel %vm779, %v750, %v778
        %vm781 = vcmp.eq.f32.partialorder %v750, 0.0
        %v782 = vand.u32 %v750, 2147483648
        %v783 = vsel %vm781, %v782, %v780
        %v784 = vrsqrt.pop %v753
        %v785 = vmul.f32 %v784, %v753
        %v786 = vmul.f32 %v785, %v784
        %v787 = vmul.f32 0.5, %v786
        %v788 = vsub.f32 1.5, %v787
        %v789 = vmul.f32 %v784, %v788
        %v790 = vmul.f32 %v753, %v789
        %vm791 = vcmp.eq.f32.partialorder %v753, inf
        %v792 = vsel %vm791, %v753, %v790
        %vm793 = vcmp.eq.f32.partialorder %v753, 0.0
        %v794 = vand.u32 %v753, 2147483648
        %v795 = vsel %vm793, %v794, %v792
        %v796 = vrsqrt.pop %v756
        %v797 = vmul.f32 %v796, %v756
        %v798 = vmul.f32 %v797, %v796
        %v799 = vmul.f32 0.5, %v798
        %v800 = vsub.f32 1.5, %v799
        %v801 = vmul.f32 %v796, %v800
        %v802 = vmul.f32 %v756, %v801
        %vm803 = vcmp.eq.f32.partialorder %v756, inf
        %v804 = vsel %vm803, %v756, %v802
        %vm805 = vcmp.eq.f32.partialorder %v756, 0.0
        %v806 = vand.u32 %v756, 2147483648
        %v807 = vsel %vm805, %v806, %v804
        %v808 = vrsqrt.pop %v759
        %v809 = vmul.f32 %v808, %v759
        %v810 = vmul.f32 %v809, %v808
        %v811 = vmul.f32 0.5, %v810
        %v812 = vsub.f32 1.5, %v811
        %v813 = vmul.f32 %v808, %v812
        %v814 = vmul.f32 %v759, %v813
        %vm815 = vcmp.eq.f32.partialorder %v759, inf
        %v816 = vsel %vm815, %v759, %v814
        %vm817 = vcmp.eq.f32.partialorder %v759, 0.0
        %v818 = vand.u32 %v759, 2147483648
        %v819 = vsel %vm817, %v818, %v816
        %v820 = vrsqrt.pop %v762
        %v821 = vmul.f32 %v820, %v762
        %v822 = vmul.f32 %v821, %v820
        %v823 = vmul.f32 0.5, %v822
        %v824 = vsub.f32 1.5, %v823
        %v825 = vmul.f32 %v820, %v824
        %v826 = vmul.f32 %v762, %v825
        %vm827 = vcmp.eq.f32.partialorder %v762, inf
        %v828 = vsel %vm827, %v762, %v826
        %vm829 = vcmp.eq.f32.partialorder %v762, 0.0
        %v830 = vand.u32 %v762, 2147483648
        %v831 = vsel %vm829, %v830, %v828
        %v832 = vrsqrt.pop %v765
        %v833 = vmul.f32 %v832, %v765
        %v834 = vmul.f32 %v833, %v832
        %v835 = vmul.f32 0.5, %v834
        %v836 = vsub.f32 1.5, %v835
        %v837 = vmul.f32 %v832, %v836
        %v838 = vmul.f32 %v765, %v837
        %vm839 = vcmp.eq.f32.partialorder %v765, inf
        %v840 = vsel %vm839, %v765, %v838
        %vm841 = vcmp.eq.f32.partialorder %v765, 0.0
        %v842 = vand.u32 %v765, 2147483648
        %v843 = vsel %vm841, %v842, %v840
        %v844 = vrsqrt.pop %v768
        %v845 = vmul.f32 %v844, %v768
        %v846 = vmul.f32 %v845, %v844
        %v847 = vmul.f32 0.5, %v846
        %v848 = vsub.f32 1.5, %v847
        %v849 = vmul.f32 %v844, %v848
        %v850 = vmul.f32 %v768, %v849
        %vm851 = vcmp.eq.f32.partialorder %v768, inf
        %v852 = vsel %vm851, %v768, %v850
        %vm853 = vcmp.eq.f32.partialorder %v768, 0.0
        %v854 = vand.u32 %v768, 2147483648
        %v855 = vsel %vm853, %v854, %v852
        %v856 = vrsqrt.pop %v771
        %v857 = vmul.f32 %v856, %v771
        %v858 = vmul.f32 %v857, %v856
        %v859 = vmul.f32 0.5, %v858
        %v860 = vsub.f32 1.5, %v859
        %v861 = vmul.f32 %v856, %v860
        %v862 = vmul.f32 %v771, %v861
        %vm863 = vcmp.eq.f32.partialorder %v771, inf
        %v864 = vsel %vm863, %v771, %v862
        %vm865 = vcmp.eq.f32.partialorder %v771, 0.0
        %v866 = vand.u32 %v771, 2147483648
        %v867 = vsel %vm865, %v866, %v864
        %v868 = vmul.f32 %v588, %v588
        %vm869 = vcmask 125952
        %v870 = vsel %vm869, %v868, 0.0
        %871 = vadd.xlane.f32.xlu0 %v870
        %v872 = vpop.xlane.xlu0 %871
        %v873 = vrsqrt.pop %v872
        %v874 = vmul.f32 %v873, %v872
        %v875 = vmul.f32 %v874, %v873
        %v876 = vmul.f32 0.5, %v875
        %v877 = vsub.f32 1.5, %v876
        %v878 = vmul.f32 %v873, %v877
        %v879 = vmul.f32 %v872, %v878
        %vm880 = vcmp.eq.f32.partialorder %v872, inf
        %v881 = vsel %vm880, %v872, %v879
        %vm882 = vcmp.eq.f32.partialorder %v872, 0.0
        %v883 = vand.u32 %v872, 2147483648
        %v884 = vsel %vm882, %v883, %v881
        %v886 = vperm.slane %v884, 0
        %v887 = vperm.slane %v884, 1
        %v888 = vperm.slane %v884, 2
        %v889 = vperm.slane %v884, 3
        %v894 = vmul.f32 %v783, %v886
        %v895 = vmul.f32 %v795, %v886
        %v896 = vmul.f32 %v807, %v886
        %v897 = vmul.f32 %v819, %v886
        %v898 = vmul.f32 %v831, %v887
        %v899 = vmul.f32 %v843, %v887
        %v900 = vmul.f32 %v855, %v887
        %v901 = vmul.f32 %v867, %v887
        %v902 = vmul.f32 %v783, %v888
        %v903 = vmul.f32 %v795, %v888
        %v904 = vmul.f32 %v807, %v888
        %v905 = vmul.f32 %v819, %v888
        %v906 = vmul.f32 %v831, %v889
        %v907 = vmul.f32 %v843, %v889
        %v908 = vmul.f32 %v855, %v889
        %v909 = vmul.f32 %v867, %v889
        %v910 = vmax.f32 %v894, 1e-08
        %v911 = vmax.f32 %v895, 1e-08
        %v912 = vmax.f32 %v896, 1e-08
        %v913 = vmax.f32 %v897, 1e-08
        %v914 = vmax.f32 %v898, 1e-08
        %v915 = vmax.f32 %v899, 1e-08
        %v916 = vmax.f32 %v900, 1e-08
        %v917 = vmax.f32 %v901, 1e-08
        %v918 = vmax.f32 %v902, 1e-08
        %v919 = vmax.f32 %v903, 1e-08
        %v920 = vmax.f32 %v904, 1e-08
        %v921 = vmax.f32 %v905, 1e-08
        %v922 = vmax.f32 %v906, 1e-08
        %v923 = vmax.f32 %v907, 1e-08
        %v924 = vmax.f32 %v908, 1e-08
        %v925 = vmax.f32 %v909, 1e-08
        %v926 = vrcp.pop %v910
        %v927 = vmul.f32 %v910, %v926
        %v928 = vsub.f32 1.0, %v927
        %v929 = vmul.f32 %v926, %v928
        %v930 = vadd.f32 %v926, %v929
        %vm931 = vweird.f32 %v910
        %vm932 = vweird.f32 %v926
        %vm933 = vmor %vm931, %vm932
        %v934 = vsel %vm933, %v926, %v930
        %v935 = vand.u32 2147483647, %v910
        %vm936 = vcmp.eq.f32.partialorder %v935, 8.507059e+37
        %v937 = vand.u32 %v910, 2147483648
        %v938 = vor.u32 1.1754944e-38, %v937
        %v939 = vsel %vm936, %v938, %v934
        %v940 = vmul.f32 %v694, %v939
        %v941 = vrcp.pop %v911
        %v942 = vmul.f32 %v911, %v941
        %v943 = vsub.f32 1.0, %v942
        %v944 = vmul.f32 %v941, %v943
        %v945 = vadd.f32 %v941, %v944
        %vm946 = vweird.f32 %v911
        %vm947 = vweird.f32 %v941
        %vm948 = vmor %vm946, %vm947
        %v949 = vsel %vm948, %v941, %v945
        %v950 = vand.u32 2147483647, %v911
        %vm951 = vcmp.eq.f32.partialorder %v950, 8.507059e+37
        %v952 = vand.u32 %v911, 2147483648
        %v953 = vor.u32 1.1754944e-38, %v952
        %v954 = vsel %vm951, %v953, %v949
        %v955 = vmul.f32 %v697, %v954
        %v956 = vrcp.pop %v912
        %v957 = vmul.f32 %v912, %v956
        %v958 = vsub.f32 1.0, %v957
        %v959 = vmul.f32 %v956, %v958
        %v960 = vadd.f32 %v956, %v959
        %vm961 = vweird.f32 %v912
        %vm962 = vweird.f32 %v956
        %vm963 = vmor %vm961, %vm962
        %v964 = vsel %vm963, %v956, %v960
        %v965 = vand.u32 2147483647, %v912
        %vm966 = vcmp.eq.f32.partialorder %v965, 8.507059e+37
        %v967 = vand.u32 %v912, 2147483648
        %v968 = vor.u32 1.1754944e-38, %v967
        %v969 = vsel %vm966, %v968, %v964
        %v970 = vmul.f32 %v700, %v969
        %v971 = vrcp.pop %v913
        %v972 = vmul.f32 %v913, %v971
        %v973 = vsub.f32 1.0, %v972
        %v974 = vmul.f32 %v971, %v973
        %v975 = vadd.f32 %v971, %v974
        %vm976 = vweird.f32 %v913
        %vm977 = vweird.f32 %v971
        %vm978 = vmor %vm976, %vm977
        %v979 = vsel %vm978, %v971, %v975
        %v980 = vand.u32 2147483647, %v913
        %vm981 = vcmp.eq.f32.partialorder %v980, 8.507059e+37
        %v982 = vand.u32 %v913, 2147483648
        %v983 = vor.u32 1.1754944e-38, %v982
        %v984 = vsel %vm981, %v983, %v979
        %v985 = vmul.f32 %v703, %v984
        %v986 = vrcp.pop %v914
        %v987 = vmul.f32 %v914, %v986
        %v988 = vsub.f32 1.0, %v987
        %v989 = vmul.f32 %v986, %v988
        %v990 = vadd.f32 %v986, %v989
        %vm991 = vweird.f32 %v914
        %vm992 = vweird.f32 %v986
        %vm993 = vmor %vm991, %vm992
        %v994 = vsel %vm993, %v986, %v990
        %v995 = vand.u32 2147483647, %v914
        %vm996 = vcmp.eq.f32.partialorder %v995, 8.507059e+37
        %v997 = vand.u32 %v914, 2147483648
        %v998 = vor.u32 1.1754944e-38, %v997
        %v999 = vsel %vm996, %v998, %v994
        %v1000 = vmul.f32 %v706, %v999
        %v1001 = vrcp.pop %v915
        %v1002 = vmul.f32 %v915, %v1001
        %v1003 = vsub.f32 1.0, %v1002
        %v1004 = vmul.f32 %v1001, %v1003
        %v1005 = vadd.f32 %v1001, %v1004
        %vm1006 = vweird.f32 %v915
        %vm1007 = vweird.f32 %v1001
        %vm1008 = vmor %vm1006, %vm1007
        %v1009 = vsel %vm1008, %v1001, %v1005
        %v1010 = vand.u32 2147483647, %v915
        %vm1011 = vcmp.eq.f32.partialorder %v1010, 8.507059e+37
        %v1012 = vand.u32 %v915, 2147483648
        %v1013 = vor.u32 1.1754944e-38, %v1012
        %v1014 = vsel %vm1011, %v1013, %v1009
        %v1015 = vmul.f32 %v709, %v1014
        %v1016 = vrcp.pop %v916
        %v1017 = vmul.f32 %v916, %v1016
        %v1018 = vsub.f32 1.0, %v1017
        %v1019 = vmul.f32 %v1016, %v1018
        %v1020 = vadd.f32 %v1016, %v1019
        %vm1021 = vweird.f32 %v916
        %vm1022 = vweird.f32 %v1016
        %vm1023 = vmor %vm1021, %vm1022
        %v1024 = vsel %vm1023, %v1016, %v1020
        %v1025 = vand.u32 2147483647, %v916
        %vm1026 = vcmp.eq.f32.partialorder %v1025, 8.507059e+37
        %v1027 = vand.u32 %v916, 2147483648
        %v1028 = vor.u32 1.1754944e-38, %v1027
        %v1029 = vsel %vm1026, %v1028, %v1024
        %v1030 = vmul.f32 %v712, %v1029
        %v1031 = vrcp.pop %v917
        %v1032 = vmul.f32 %v917, %v1031
        %v1033 = vsub.f32 1.0, %v1032
        %v1034 = vmul.f32 %v1031, %v1033
        %v1035 = vadd.f32 %v1031, %v1034
        %vm1036 = vweird.f32 %v917
        %vm1037 = vweird.f32 %v1031
        %vm1038 = vmor %vm1036, %vm1037
        %v1039 = vsel %vm1038, %v1031, %v1035
        %v1040 = vand.u32 2147483647, %v917
        %vm1041 = vcmp.eq.f32.partialorder %v1040, 8.507059e+37
        %v1042 = vand.u32 %v917, 2147483648
        %v1043 = vor.u32 1.1754944e-38, %v1042
        %v1044 = vsel %vm1041, %v1043, %v1039
        %v1045 = vmul.f32 %v715, %v1044
        %v1046 = vrcp.pop %v918
        %v1047 = vmul.f32 %v918, %v1046
        %v1048 = vsub.f32 1.0, %v1047
        %v1049 = vmul.f32 %v1046, %v1048
        %v1050 = vadd.f32 %v1046, %v1049
        %vm1051 = vweird.f32 %v918
        %vm1052 = vweird.f32 %v1046
        %vm1053 = vmor %vm1051, %vm1052
        %v1054 = vsel %vm1053, %v1046, %v1050
        %v1055 = vand.u32 2147483647, %v918
        %vm1056 = vcmp.eq.f32.partialorder %v1055, 8.507059e+37
        %v1057 = vand.u32 %v918, 2147483648
        %v1058 = vor.u32 1.1754944e-38, %v1057
        %v1059 = vsel %vm1056, %v1058, %v1054
        %v1060 = vmul.f32 %v718, %v1059
        %v1061 = vrcp.pop %v919
        %v1062 = vmul.f32 %v919, %v1061
        %v1063 = vsub.f32 1.0, %v1062
        %v1064 = vmul.f32 %v1061, %v1063
        %v1065 = vadd.f32 %v1061, %v1064
        %vm1066 = vweird.f32 %v919
        %vm1067 = vweird.f32 %v1061
        %vm1068 = vmor %vm1066, %vm1067
        %v1069 = vsel %vm1068, %v1061, %v1065
        %v1070 = vand.u32 2147483647, %v919
        %vm1071 = vcmp.eq.f32.partialorder %v1070, 8.507059e+37
        %v1072 = vand.u32 %v919, 2147483648
        %v1073 = vor.u32 1.1754944e-38, %v1072
        %v1074 = vsel %vm1071, %v1073, %v1069
        %v1075 = vmul.f32 %v721, %v1074
        %v1076 = vrcp.pop %v920
        %v1077 = vmul.f32 %v920, %v1076
        %v1078 = vsub.f32 1.0, %v1077
        %v1079 = vmul.f32 %v1076, %v1078
        %v1080 = vadd.f32 %v1076, %v1079
        %vm1081 = vweird.f32 %v920
        %vm1082 = vweird.f32 %v1076
        %vm1083 = vmor %vm1081, %vm1082
        %v1084 = vsel %vm1083, %v1076, %v1080
        %v1085 = vand.u32 2147483647, %v920
        %vm1086 = vcmp.eq.f32.partialorder %v1085, 8.507059e+37
        %v1087 = vand.u32 %v920, 2147483648
        %v1088 = vor.u32 1.1754944e-38, %v1087
        %v1089 = vsel %vm1086, %v1088, %v1084
        %v1090 = vmul.f32 %v724, %v1089
        %v1091 = vrcp.pop %v921
        %v1092 = vmul.f32 %v921, %v1091
        %v1093 = vsub.f32 1.0, %v1092
        %v1094 = vmul.f32 %v1091, %v1093
        %v1095 = vadd.f32 %v1091, %v1094
        %vm1096 = vweird.f32 %v921
        %vm1097 = vweird.f32 %v1091
        %vm1098 = vmor %vm1096, %vm1097
        %v1099 = vsel %vm1098, %v1091, %v1095
        %v1100 = vand.u32 2147483647, %v921
        %vm1101 = vcmp.eq.f32.partialorder %v1100, 8.507059e+37
        %v1102 = vand.u32 %v921, 2147483648
        %v1103 = vor.u32 1.1754944e-38, %v1102
        %v1104 = vsel %vm1101, %v1103, %v1099
        %v1105 = vmul.f32 %v727, %v1104
        %v1106 = vrcp.pop %v922
        %v1107 = vmul.f32 %v922, %v1106
        %v1108 = vsub.f32 1.0, %v1107
        %v1109 = vmul.f32 %v1106, %v1108
        %v1110 = vadd.f32 %v1106, %v1109
        %vm1111 = vweird.f32 %v922
        %vm1112 = vweird.f32 %v1106
        %vm1113 = vmor %vm1111, %vm1112
        %v1114 = vsel %vm1113, %v1106, %v1110
        %v1115 = vand.u32 2147483647, %v922
        %vm1116 = vcmp.eq.f32.partialorder %v1115, 8.507059e+37
        %v1117 = vand.u32 %v922, 2147483648
        %v1118 = vor.u32 1.1754944e-38, %v1117
        %v1119 = vsel %vm1116, %v1118, %v1114
        %v1120 = vmul.f32 %v730, %v1119
        %v1121 = vrcp.pop %v923
        %v1122 = vmul.f32 %v923, %v1121
        %v1123 = vsub.f32 1.0, %v1122
        %v1124 = vmul.f32 %v1121, %v1123
        %v1125 = vadd.f32 %v1121, %v1124
        %vm1126 = vweird.f32 %v923
        %vm1127 = vweird.f32 %v1121
        %vm1128 = vmor %vm1126, %vm1127
        %v1129 = vsel %vm1128, %v1121, %v1125
        %v1130 = vand.u32 2147483647, %v923
        %vm1131 = vcmp.eq.f32.partialorder %v1130, 8.507059e+37
        %v1132 = vand.u32 %v923, 2147483648
        %v1133 = vor.u32 1.1754944e-38, %v1132
        %v1134 = vsel %vm1131, %v1133, %v1129
        %v1135 = vmul.f32 %v733, %v1134
        %v1136 = vrcp.pop %v924
        %v1137 = vmul.f32 %v924, %v1136
        %v1138 = vsub.f32 1.0, %v1137
        %v1139 = vmul.f32 %v1136, %v1138
        %v1140 = vadd.f32 %v1136, %v1139
        %vm1141 = vweird.f32 %v924
        %vm1142 = vweird.f32 %v1136
        %vm1143 = vmor %vm1141, %vm1142
        %v1144 = vsel %vm1143, %v1136, %v1140
        %v1145 = vand.u32 2147483647, %v924
        %vm1146 = vcmp.eq.f32.partialorder %v1145, 8.507059e+37
        %v1147 = vand.u32 %v924, 2147483648
        %v1148 = vor.u32 1.1754944e-38, %v1147
        %v1149 = vsel %vm1146, %v1148, %v1144
        %v1150 = vmul.f32 %v736, %v1149
        %v1151 = vrcp.pop %v925
        %v1152 = vmul.f32 %v925, %v1151
        %v1153 = vsub.f32 1.0, %v1152
        %v1154 = vmul.f32 %v1151, %v1153
        %v1155 = vadd.f32 %v1151, %v1154
        %vm1156 = vweird.f32 %v925
        %vm1157 = vweird.f32 %v1151
        %vm1158 = vmor %vm1156, %vm1157
        %v1159 = vsel %vm1158, %v1151, %v1155
        %v1160 = vand.u32 2147483647, %v925
        %vm1161 = vcmp.eq.f32.partialorder %v1160, 8.507059e+37
        %v1162 = vand.u32 %v925, 2147483648
        %v1163 = vor.u32 1.1754944e-38, %v1162
        %v1164 = vsel %vm1161, %v1163, %v1159
        %v1165 = vmul.f32 %v739, %v1164
        %1167 = vset.pattern.permute.xlu0 16
        %1168 = vperm.xlu0 %1167, %v596
        %v1169 = vpop.permute.xlu0 %1168
        %1187 = vset.pattern.permute.xlu0 0
        %1188 = vperm.xlu0 %1187, %v940
        %v1189 = vpop.permute.xlu0 %1188
        %1190 = vset.pattern.permute.xlu0 0
        %1191 = vperm.xlu0 %1190, %v955
        %v1192 = vpop.permute.xlu0 %1191
        %1193 = vset.pattern.permute.xlu0 0
        %1194 = vperm.xlu0 %1193, %v970
        %v1195 = vpop.permute.xlu0 %1194
        %1196 = vset.pattern.permute.xlu0 0
        %1197 = vperm.xlu0 %1196, %v985
        %v1198 = vpop.permute.xlu0 %1197
        %1199 = vset.pattern.permute.xlu0 0
        %1200 = vperm.xlu0 %1199, %v1000
        %v1201 = vpop.permute.xlu0 %1200
        %1202 = vset.pattern.permute.xlu0 0
        %1203 = vperm.xlu0 %1202, %v1015
        %v1204 = vpop.permute.xlu0 %1203
        %1205 = vset.pattern.permute.xlu0 0
        %1206 = vperm.xlu0 %1205, %v1030
        %v1207 = vpop.permute.xlu0 %1206
        %1208 = vset.pattern.permute.xlu0 0
        %1209 = vperm.xlu0 %1208, %v1045
        %v1210 = vpop.permute.xlu0 %1209
        %1211 = vset.pattern.permute.xlu0 0
        %1212 = vperm.xlu0 %1211, %v1060
        %v1213 = vpop.permute.xlu0 %1212
        %1214 = vset.pattern.permute.xlu0 0
        %1215 = vperm.xlu0 %1214, %v1075
        %v1216 = vpop.permute.xlu0 %1215
        %1217 = vset.pattern.permute.xlu0 0
        %1218 = vperm.xlu0 %1217, %v1090
        %v1219 = vpop.permute.xlu0 %1218
        %1220 = vset.pattern.permute.xlu0 0
        %1221 = vperm.xlu0 %1220, %v1105
        %v1222 = vpop.permute.xlu0 %1221
        %1223 = vset.pattern.permute.xlu0 0
        %1224 = vperm.xlu0 %1223, %v1120
        %v1225 = vpop.permute.xlu0 %1224
        %1226 = vset.pattern.permute.xlu0 0
        %1227 = vperm.xlu0 %1226, %v1135
        %v1228 = vpop.permute.xlu0 %1227
        %1229 = vset.pattern.permute.xlu0 0
        %1230 = vperm.xlu0 %1229, %v1150
        %v1231 = vpop.permute.xlu0 %1230
        %1232 = vset.pattern.permute.xlu0 0
        %1233 = vperm.xlu0 %1232, %v1165
        %v1234 = vpop.permute.xlu0 %1233
        %v1235 = vlaneseq
        %v1236 = vand.u32 %v1235, 127
        %v1237 = vperm.slane %v1189, %v1236
        %v1238 = vadd.s32 %v1236, 4294967288
        %v1239 = vperm.slane %v1192, %v1238
        %vm1240 = vcmask 130112
        %v1241 = vsel %vm1240, %v1239, %v1237
        %v1242 = vadd.s32 %v1236, 4294967280
        %v1243 = vperm.slane %v1195, %v1242
        %vm1244 = vcmask 195712
        %v1245 = vsel %vm1244, %v1243, %v1241
        %v1246 = vadd.s32 %v1236, 4294967272
        %v1247 = vperm.slane %v1198, %v1246
        %vm1248 = vcmask 261312
        %v1249 = vsel %vm1248, %v1247, %v1245
        %v1250 = vperm.slane %v1201, %v1236
        %v1251 = vperm.slane %v1204, %v1238
        %v1252 = vsel %vm1240, %v1251, %v1250
        %v1253 = vperm.slane %v1207, %v1242
        %v1254 = vsel %vm1244, %v1253, %v1252
        %v1255 = vperm.slane %v1210, %v1246
        %v1256 = vsel %vm1248, %v1255, %v1254
        %v1257 = vperm.slane %v1213, %v1236
        %v1258 = vperm.slane %v1216, %v1238
        %v1259 = vsel %vm1240, %v1258, %v1257
        %v1260 = vperm.slane %v1219, %v1242
        %v1261 = vsel %vm1244, %v1260, %v1259
        %v1262 = vperm.slane %v1222, %v1246
        %v1263 = vsel %vm1248, %v1262, %v1261
        %v1264 = vperm.slane %v1225, %v1236
        %v1265 = vperm.slane %v1228, %v1238
        %v1266 = vsel %vm1240, %v1265, %v1264
        %v1267 = vperm.slane %v1231, %v1242
        %v1268 = vsel %vm1244, %v1267, %v1266
        %v1269 = vperm.slane %v1234, %v1246
        %v1270 = vsel %vm1248, %v1269, %v1268
        %vm1271 = vcmask 1041409
        %v1272 = vsel %vm1271, %v1256, %v1249
        %vm1273 = vcmask 1042434
        %v1274 = vsel %vm1273, %v1263, %v1272
        %vm1275 = vcmask 1043459
        %v1276 = vsel %vm1275, %v1270, %v1274
        %v1278 = vmul.f32 %v1169, %v1276
        %vm1279 = vcmask 257024
        %v1280 = vsel %vm1279, %v1278, -inf
        %1281 = vmax.xlane.f32.xlu0 %v1280
        %v1282 = vpop.xlane.xlu0 %1281
        %v1283 = vsub.f32 %v1278, %v1282
        %v1284 = vmul.f32 %v1283, 1.442695
        %v1285 = vpow.pop %v1284
        %v1286 = vsel %vm1279, %v1285, 0.0
        %1287 = vadd.xlane.f32.xlu0 %v1286
        %v1288 = vpop.xlane.xlu0 %1287
        %v1289 = vrcp.pop %v1288
        %v1290 = vmul.f32 %v1288, %v1289
        %v1291 = vsub.f32 1.0, %v1290
        %v1292 = vmul.f32 %v1289, %v1291
        %v1293 = vadd.f32 %v1289, %v1292
        %vm1294 = vweird.f32 %v1288
        %vm1295 = vweird.f32 %v1289
        %vm1296 = vmor %vm1294, %vm1295
        %v1297 = vsel %vm1296, %v1289, %v1293
        %v1298 = vand.u32 2147483647, %v1288
        %vm1299 = vcmp.eq.f32.partialorder %v1298, 8.507059e+37
        %v1300 = vand.u32 %v1288, 2147483648
        %v1301 = vor.u32 1.1754944e-38, %v1300
        %v1302 = vsel %vm1299, %v1301, %v1297
        %v1303 = vmul.f32 %v1285, %v1302
        %v1304 = vld [vmem:[#allocation5] sm:$0xf]
        %1306 = vset.pattern.permute.xlu0 17
        %1307 = vperm.xlu0 %1306, %v615
        %v1308 = vpop.permute.xlu0 %1307
        %v1310 = vmul.f32 %v1308, %v1304
        %v1311 = vsub.f32 1.0, %v615
        %1313 = vset.pattern.permute.xlu0 17
        %1314 = vperm.xlu0 %1313, %v1311
        %v1315 = vpop.permute.xlu0 %1314
        %v1317 = vmul.f32 %v1315, %v1303
        %v1318 = vadd.f32 %v1310, %v1317
        %v1319 = vld [vmem:[#allocation7] sm:$0xff]
        %v1320 = vld [vmem:[#allocation7 + $0x8] sm:$0xff]
        %v1321 = vld [vmem:[#allocation7 + $0x10] sm:$0xff]
        %v1322 = vld [vmem:[#allocation7 + $0x18] sm:$0xff]
        %v1324 = vsel %vm557, %v1318, 0
        %1326 = vmatpush.msra.mxu0 0.0
        %1327 = vmatpush.msra.mxu0 0.0
        %1328 = vmatpush.msra.mxu0 0.0
        %1329 = vmatpush.msra.mxu0 0.0
        %1330 = vmatpush.msra.mxu0 0.0
        %1331 = vmatpush.msra.mxu0 0.0
        %1332 = vmatpush.msra.mxu0 0.0
        %1333 = vmatpush.msra.mxu0 0.0
        %1334 = vmatpush.msra.mxu0 0.0
        %1335 = vmatpush.msra.mxu0 0.0
        %1336 = vmatpush.msra.mxu0 0.0
        %1337 = vmatpush.msra.mxu0 0.0
        %1338 = vmatpush.msra.mxu0 %v1322
        %1339 = vmatpush.msra.mxu0 %v1321
        %1340 = vmatpush.msra.mxu0 %v1320
        %1341 = vmatpush.msra.mxu0 %v1319
        %1342 = vmatmul.f32.gmra.mxu0 %v1324
        %v1343 = vpop.f32.mrf.mxu0
        %v1344 = vadd.f32 0.0, %v1343
        %1345 = vdwg.mxu0
        %1347 = vset.pattern.permute.xlu0 18
        %1348 = vperm.xlu0 %1347, %v645
        %v1349 = vpop.permute.xlu0 %1348
        %v1351 = vmul.f32 %v1349, %v1344
        %1352 = vset.pattern.permute.xlu0 19
        %1353 = vperm.xlu0 %1352, %v645
        %v1354 = vpop.permute.xlu0 %1353
        %v1356 = vmul.f32 %v1354, %v1318
        %v1357 = vadd.f32 %v1351, %v1356
        %1358 = vset.pattern.permute.xlu0 20
        %1359 = vperm.xlu0 %1358, %v645
        %v1360 = vpop.permute.xlu0 %1359
        %v1362 = vmul.f32 %v1360, %v1344
        %1364 = vrot.lane.b32.xlu0 %v1362, 96
        %v1365 = vpop.permute.xlu0 %1364
        %v1367 = vadd.f32 %v1357, %v1365
        %v1368 = vmax.f32 %v1367, 1e-30
        %v1369 = vlog2.pop %v1368
        %v1370 = vmul.f32 %v1369, 0.6931472
        %1372 = vset.pattern.permute.xlu0 21
        %1373 = vperm.xlu0 %1372, %v646
        %v1374 = vpop.permute.xlu0 %1373
        %v1376 = vmul.f32 %v1374, %v1370
        %v1377 = vmul.f32 %v1376, 1.442695
        %v1378 = vpow.pop %v1377
        %v1379 = vsel %vm1279, %v1378, 0.0
        %1380 = vadd.xlane.f32.xlu0 %v1379
        %v1381 = vpop.xlane.xlu0 %1380
        %v1382 = vadd.f32 %v1381, 1e-08
        %v1383 = vrcp.pop %v1382
        %v1384 = vmul.f32 %v1382, %v1383
        %v1385 = vsub.f32 1.0, %v1384
        %v1386 = vmul.f32 %v1383, %v1385
        %v1387 = vadd.f32 %v1383, %v1386
        %vm1388 = vweird.f32 %v1382
        %vm1389 = vweird.f32 %v1383
        %vm1390 = vmor %vm1388, %vm1389
        %v1391 = vsel %vm1390, %v1383, %v1387
        %v1392 = vand.u32 2147483647, %v1382
        %vm1393 = vcmp.eq.f32.partialorder %v1392, 8.507059e+37
        %v1394 = vand.u32 %v1382, 2147483648
        %v1395 = vor.u32 1.1754944e-38, %v1394
        %v1396 = vsel %vm1393, %v1395, %v1391
        %v1397 = vmul.f32 %v1378, %v1396
        %1398 = vst.msk [vmem:[#allocation5] sm:$0xf] %vm1279, %v1397
        %v1399 = vsel %vm539, %v1397, 0.0
        %v1400 = vrot.slane %v1399, 4
        %v1401 = vadd.f32 %v1399, %v1400
        %v1402 = vrot.slane %v1401, 2
        %v1403 = vadd.f32 %v1401, %v1402
        %v1404 = vrot.slane %v1403, 1
        %v1405 = vadd.f32 %v1403, %v1404
        %v1406 = vlaneseq
        %v1407 = vshrl.u32 %v1406, 7
        %1409 = vset.pattern.permute.xlu0 %v1407
        %1410 = vperm.xlu0 %1409, %v1405
        %v1411 = vpop.permute.xlu0 %1410
        %v1412 = vlaneseq
        %v1413 = vshrl.u32 %v1412, 7
        %v1414 = vadd.s32 %v1413, 8
        %1415 = vset.pattern.permute.xlu0 %v1414
        %1416 = vperm.xlu0 %1415, %v1405
        %v1417 = vpop.permute.xlu0 %1416
        %v1418 = vlaneseq
        %v1419 = vshrl.u32 %v1418, 7
        %v1420 = vadd.s32 %v1419, 16
        %1421 = vset.pattern.permute.xlu0 %v1420
        %1422 = vperm.xlu0 %1421, %v1405
        %v1423 = vpop.permute.xlu0 %1422
        %v1424 = vlaneseq
        %v1425 = vshrl.u32 %v1424, 7
        %v1426 = vadd.s32 %v1425, 24
        %1427 = vset.pattern.permute.xlu0 %v1426
        %1428 = vperm.xlu0 %1427, %v1405
        %v1429 = vpop.permute.xlu0 %1428
        %v1430 = vmul.f32 %v1411, %v647
        %v1431 = vmul.f32 %v1417, %v648
        %v1432 = vmul.f32 %v1423, %v649
        %v1433 = vmul.f32 %v1429, %v650
        %v1434 = vmul.f32 %v1411, %v651
        %v1435 = vmul.f32 %v1417, %v652
        %v1436 = vmul.f32 %v1423, %v653
        %v1437 = vmul.f32 %v1429, %v654
        %v1438 = vsel %vm691, %v1430, 0.0
        %v1439 = vsel %vm691, %v1431, 0.0
        %v1440 = vadd.f32 %v1438, %v1439
        %v1441 = vsel %vm691, %v1432, 0.0
        %v1442 = vadd.f32 %v1440, %v1441
        %v1443 = vsel %vm691, %v1433, 0.0
        %v1444 = vadd.f32 %v1442, %v1443
        %v1445 = vrot.slane %v1444, 4
        %v1446 = vadd.f32 %v1444, %v1445
        %v1447 = vrot.slane %v1446, 2
        %v1448 = vadd.f32 %v1446, %v1447
        %v1449 = vrot.slane %v1448, 1
        %v1450 = vadd.f32 %v1448, %v1449
        %v1451 = vsel %vm691, %v1434, 0.0
        %v1452 = vsel %vm691, %v1435, 0.0
        %v1453 = vadd.f32 %v1451, %v1452
        %v1454 = vsel %vm691, %v1436, 0.0
        %v1455 = vadd.f32 %v1453, %v1454
        %v1456 = vsel %vm691, %v1437, 0.0
        %v1457 = vadd.f32 %v1455, %v1456
        %v1458 = vrot.slane %v1457, 4
        %v1459 = vadd.f32 %v1457, %v1458
        %v1460 = vrot.slane %v1459, 2
        %v1461 = vadd.f32 %v1459, %v1460
        %v1462 = vrot.slane %v1461, 1
        %v1463 = vadd.f32 %v1461, %v1462
        %v1466 = vsel %vm1271, %v1463, %v1450
        %1467 = vrot.lane.b32.xlu0 %v1466, 16
        %v1468 = vpop.permute.xlu0 %1467
        %vm1470 = vcmask 255104
        %1471 = vst.msk [vmem:[#allocation3] sm:$0x3] %vm1470, %v1468
        %v1472 = vxor.u32 %v578, 2147483648
        %v1473 = vmul.f32 %v1472, 1.442695
        %v1474 = vpow.pop %v1473
        %v1475 = vadd.f32 %v1474, 1.0
        %v1476 = vrcp.pop %v1475
        %v1477 = vmul.f32 %v1475, %v1476
        %v1478 = vsub.f32 1.0, %v1477
        %v1479 = vmul.f32 %v1476, %v1478
        %v1480 = vadd.f32 %v1476, %v1479
        %vm1481 = vweird.f32 %v1475
        %vm1482 = vweird.f32 %v1476
        %vm1483 = vmor %vm1481, %vm1482
        %v1484 = vsel %vm1483, %v1476, %v1480
        %v1485 = vand.u32 2147483647, %v1475
        %vm1486 = vcmp.eq.f32.partialorder %v1485, 8.507059e+37
        %v1487 = vand.u32 %v1475, 2147483648
        %v1488 = vor.u32 1.1754944e-38, %v1487
        %v1489 = vsel %vm1486, %v1488, %v1484
        %v1490 = vmul.f32 1.0, %v1489
        %v1491 = vperm.slane %v1397, 2
        %v1492 = vlaneseq
        %v1493 = vshrl.u32 %v1492, 7
        %1495 = vset.pattern.permute.xlu0 %v1493
        %1496 = vperm.xlu0 %1495, %v1491
        %v1497 = vpop.permute.xlu0 %1496
        %v1498 = vlaneseq
        %v1499 = vshrl.u32 %v1498, 7
        %v1500 = vadd.s32 %v1499, 8
        %1501 = vset.pattern.permute.xlu0 %v1500
        %1502 = vperm.xlu0 %1501, %v1491
        %v1503 = vpop.permute.xlu0 %1502
        %v1504 = vlaneseq
        %v1505 = vshrl.u32 %v1504, 7
        %v1506 = vadd.s32 %v1505, 16
        %1507 = vset.pattern.permute.xlu0 %v1506
        %1508 = vperm.xlu0 %1507, %v1491
        %v1509 = vpop.permute.xlu0 %1508
        %v1510 = vlaneseq
        %v1511 = vshrl.u32 %v1510, 7
        %v1512 = vadd.s32 %v1511, 24
        %1513 = vset.pattern.permute.xlu0 %v1512
        %1514 = vperm.xlu0 %1513, %v1491
        %v1515 = vpop.permute.xlu0 %1514
        %v1516 = vperm.slane %v1397, 3
        %v1517 = vlaneseq
        %v1518 = vshrl.u32 %v1517, 7
        %1520 = vset.pattern.permute.xlu0 %v1518
        %1521 = vperm.xlu0 %1520, %v1516
        %v1522 = vpop.permute.xlu0 %1521
        %v1523 = vlaneseq
        %v1524 = vshrl.u32 %v1523, 7
        %v1525 = vadd.s32 %v1524, 8
        %1526 = vset.pattern.permute.xlu0 %v1525
        %1527 = vperm.xlu0 %1526, %v1516
        %v1528 = vpop.permute.xlu0 %1527
        %v1529 = vlaneseq
        %v1530 = vshrl.u32 %v1529, 7
        %v1531 = vadd.s32 %v1530, 16
        %1532 = vset.pattern.permute.xlu0 %v1531
        %1533 = vperm.xlu0 %1532, %v1516
        %v1534 = vpop.permute.xlu0 %1533
        %v1535 = vlaneseq
        %v1536 = vshrl.u32 %v1535, 7
        %v1537 = vadd.s32 %v1536, 24
        %1538 = vset.pattern.permute.xlu0 %v1537
        %1539 = vperm.xlu0 %1538, %v1516
        %v1540 = vpop.permute.xlu0 %1539
        %v1542 = vrot.slane %v1490, 1
        %v1543 = vperm.slane %v1490, 0
        %v1544 = vperm.slane %v1542, 0
        %v1547 = vmul.f32 %v1497, %v1543
        %v1548 = vmul.f32 %v1503, %v1543
        %v1549 = vmul.f32 %v1509, %v1543
        %v1550 = vmul.f32 %v1515, %v1543
        %v1551 = vmul.f32 %v1522, %v1544
        %v1552 = vmul.f32 %v1528, %v1544
        %v1553 = vmul.f32 %v1534, %v1544
        %v1554 = vmul.f32 %v1540, %v1544
        %v1555 = vsub.f32 1.0, %v1547
        %v1556 = vsub.f32 1.0, %v1548
        %v1557 = vsub.f32 1.0, %v1549
        %v1558 = vsub.f32 1.0, %v1550
        %v1559 = vsub.f32 1.0, %v1551
        %v1560 = vsub.f32 1.0, %v1552
        %v1561 = vsub.f32 1.0, %v1553
        %v1562 = vsub.f32 1.0, %v1554
        %1571 = vrot.lane.b32.xlu0 %v1555, 84
        %v1572 = vpop.permute.xlu0 %1571
        %1573 = vrot.lane.b32.xlu0 %v1556, 84
        %v1574 = vpop.permute.xlu0 %1573
        %1575 = vrot.lane.b32.xlu0 %v1557, 84
        %v1576 = vpop.permute.xlu0 %1575
        %1577 = vrot.lane.b32.xlu0 %v1558, 84
        %v1578 = vpop.permute.xlu0 %1577
        %1579 = vrot.lane.b32.xlu0 %v1559, 84
        %v1580 = vpop.permute.xlu0 %1579
        %1581 = vrot.lane.b32.xlu0 %v1560, 84
        %v1582 = vpop.permute.xlu0 %1581
        %1583 = vrot.lane.b32.xlu0 %v1561, 84
        %v1584 = vpop.permute.xlu0 %1583
        %1585 = vrot.lane.b32.xlu0 %v1562, 84
        %v1586 = vpop.permute.xlu0 %1585
        %v1595 = vmul.f32 %v647, %v1572
        %v1596 = vmul.f32 %v648, %v1574
        %v1597 = vmul.f32 %v649, %v1576
        %v1598 = vmul.f32 %v650, %v1578
        %v1599 = vmul.f32 %v651, %v1580
        %v1600 = vmul.f32 %v652, %v1582
        %v1601 = vmul.f32 %v653, %v1584
        %v1602 = vmul.f32 %v654, %v1586
        %v1603 = vrot.slane %v578, 1
        %v1604 = vperm.slane %v578, 0
        %v1605 = vperm.slane %v1603, 0
        %v1608 = vmul.f32 %v1497, %v1604
        %v1609 = vmul.f32 %v1503, %v1604
        %v1610 = vmul.f32 %v1509, %v1604
        %v1611 = vmul.f32 %v1515, %v1604
        %v1612 = vmul.f32 %v1522, %v1605
        %v1613 = vmul.f32 %v1528, %v1605
        %v1614 = vmul.f32 %v1534, %v1605
        %v1615 = vmul.f32 %v1540, %v1605
        %1624 = vrot.lane.b32.xlu0 %v1608, 68
        %v1625 = vpop.permute.xlu0 %1624
        %1626 = vrot.lane.b32.xlu0 %v1609, 68
        %v1627 = vpop.permute.xlu0 %1626
        %1628 = vrot.lane.b32.xlu0 %v1610, 68
        %v1629 = vpop.permute.xlu0 %1628
        %1630 = vrot.lane.b32.xlu0 %v1611, 68
        %v1631 = vpop.permute.xlu0 %1630
        %1632 = vrot.lane.b32.xlu0 %v1612, 68
        %v1633 = vpop.permute.xlu0 %1632
        %1634 = vrot.lane.b32.xlu0 %v1613, 68
        %v1635 = vpop.permute.xlu0 %1634
        %1636 = vrot.lane.b32.xlu0 %v1614, 68
        %v1637 = vpop.permute.xlu0 %1636
        %1638 = vrot.lane.b32.xlu0 %v1615, 68
        %v1639 = vpop.permute.xlu0 %1638
        %v1648 = vadd.f32 %v1595, %v1625
        %v1649 = vadd.f32 %v1596, %v1627
        %v1650 = vadd.f32 %v1597, %v1629
        %v1651 = vadd.f32 %v1598, %v1631
        %v1652 = vadd.f32 %v1599, %v1633
        %v1653 = vadd.f32 %v1600, %v1635
        %v1654 = vadd.f32 %v1601, %v1637
        %v1655 = vadd.f32 %v1602, %v1639
        %1656 = vst.msk [vmem:[#allocation2] sm:$0xff] %vm691, %v1648
        %1657 = vst.msk [vmem:[#allocation2 + $0x8] sm:$0xff] %vm691, %v1649
        %1658 = vst.msk [vmem:[#allocation2 + $0x10] sm:$0xff] %vm691, %v1650
        %1659 = vst.msk [vmem:[#allocation2 + $0x18] sm:$0xff] %vm691, %v1651
        %1660 = vst.msk [vmem:[#allocation2 + $0x20] sm:$0xff] %vm691, %v1652
        %1661 = vst.msk [vmem:[#allocation2 + $0x28] sm:$0xff] %vm691, %v1653
        %1662 = vst.msk [vmem:[#allocation2 + $0x30] sm:$0xff] %vm691, %v1654
        %1663 = vst.msk [vmem:[#allocation2 + $0x38] sm:$0xff] %vm691, %v1655
        %v1664 = vld [vmem:[#allocation3] sm:$0x3]
        %v1665 = vld [vmem:[%s7] sm:$0xff]
        %v1666 = vld [vmem:[%s7 + $0x8] sm:$0xff]
        %v1667 = vld [vmem:[%s7 + $0x10] sm:$0xff]
        %v1668 = vld [vmem:[%s7 + $0x18] sm:$0xff]
        %v1669 = vld [vmem:[%s7 + $0x20] sm:$0xff]
        %v1670 = vld [vmem:[%s7 + $0x28] sm:$0xff]
        %v1671 = vld [vmem:[%s8] sm:$0x1]
        %v1673 = vperm.slane %v1671, 0
        %1676 = vrot.lane.b32.xlu0 %v1664, 112
        %v1677 = vpop.permute.xlu0 %1676
        %vm1678 = vcmask 392192
        %v1679 = vsel %vm1678, %v1677, 0
        %1681 = vmatpush.msra.mxu0 0.0
        %1682 = vmatpush.msra.mxu0 0.0
        %1683 = vmatpush.msra.mxu0 0.0
        %1684 = vmatpush.msra.mxu0 0.0
        %1685 = vmatpush.msra.mxu0 0.0
        %1686 = vmatpush.msra.mxu0 0.0
        %1687 = vmatpush.msra.mxu0 0.0
        %1688 = vmatpush.msra.mxu0 0.0
        %1689 = vmatpush.msra.mxu0 0.0
        %1690 = vmatpush.msra.mxu0 0.0
        %1691 = vmatpush.msra.mxu0 %v1670
        %1692 = vmatpush.msra.mxu0 %v1669
        %1693 = vmatpush.msra.mxu0 %v1668
        %1694 = vmatpush.msra.mxu0 %v1667
        %1695 = vmatpush.msra.mxu0 %v1666
        %1696 = vmatpush.msra.mxu0 %v1665
        %1697 = vmatmul.f32.gmra.mxu0 %v1679
        %v1698 = vpop.f32.mrf.mxu0
        %v1699 = vadd.f32 %v1673, %v1698
        %1700 = vdwg.mxu0
        %v1701 = vxor.u32 %v1699, 2147483648
        %v1702 = vmul.f32 %v1701, 1.442695
        %v1703 = vpow.pop %v1702
        %v1704 = vadd.f32 %v1703, 1.0
        %v1705 = vrcp.pop %v1704
        %v1706 = vmul.f32 %v1704, %v1705
        %v1707 = vsub.f32 1.0, %v1706
        %v1708 = vmul.f32 %v1705, %v1707
        %v1709 = vadd.f32 %v1705, %v1708
        %vm1710 = vweird.f32 %v1704
        %vm1711 = vweird.f32 %v1705
        %vm1712 = vmor %vm1710, %vm1711
        %v1713 = vsel %vm1712, %v1705, %v1709
        %v1714 = vand.u32 2147483647, %v1704
        %vm1715 = vcmp.eq.f32.partialorder %v1714, 8.507059e+37
        %v1716 = vand.u32 %v1704, 2147483648
        %v1717 = vor.u32 1.1754944e-38, %v1716
        %v1718 = vsel %vm1715, %v1717, %v1713
        %v1719 = vmul.f32 1.0, %v1718
        %1720 = vst [vmem:[%s390] sm:$0xf] 0.0
        %vm1721 = vcmask 58368
        %1722 = vst.msk [vmem:[%s390] sm:$0x3] %vm1721, %v1719
        %1723 = vst.msk [vmem:[%s390] sm:$0x3] %vm545, %v543
        %1724 = vrot.lane.b32.xlu0 %v528, 32
        %v1725 = vpop.permute.xlu0 %1724
        %vm1727 = vcmask 779776
        %1728 = vst.msk [vmem:[%s390] sm:$0x3] %vm1727, %v1725
        %1730 = vrot.lane.b32.xlu0 %v1397, 96
        %v1731 = vpop.permute.xlu0 %1730
        %vm1733 = vcmask 1042176
        %1734 = vst.msk [vmem:[%s390] sm:$0x3] %vm1733, %v1731
        %1735 = vst.sshfl [vmem:[#allocation1] sm:$0xff pattern:$0x73625140] %v1397
        %s1736 = scalar_lea.vmem [#allocation1], 1
        %v1737 = vld [vmem:[%s1736] ss:$4 sm:$0xff]
        %1739 = vst.msk [vmem:[%s390 + $0x2] sm:$0x3] %vm539, %v1737
        %vm1740 = vcmask 1044484
        %v1741 = vsel %vm1740, %v1450, %v1450
        %vm1742 = vcmask 1046534
        %v1743 = vsel %vm1742, %v1450, %v1741
        %v1744 = vrot.slane %v1463, 7
        %v1745 = vsel %vm1271, %v1744, %v1743
        %v1746 = vsel %vm1275, %v1744, %v1745
        %vm1747 = vcmask 1045509
        %v1748 = vsel %vm1747, %v1744, %v1746
        %vm1749 = vcmask 1047559
        %v1750 = vsel %vm1749, %v1744, %v1748
        %1751 = vrot.lane.b32.xlu0 %v1750, 32
        %v1752 = vpop.permute.xlu0 %1751
        %vm1754 = vcmask 386304
        %1755 = vst.msk [vmem:[%s390 + $0x2] sm:$0x3] %vm1754, %v1752
        %p1756 = scmp.eq.s32.totalorder %s27, 7
        // Predicated region
        $region69: #{tpu_custom_call.1} parent=59 // pred_check
          %p1757 = pneg %p1756
        $region70: #{tpu_custom_call.1} parent=59 // pred_check_branch
          %1759 = sbr.rel (%p1757) target = $region72
        $region71: #{tpu_custom_call.1} parent=59 // pred_region
          %v1760 = vld [vmem:[#allocation2] sm:$0xff]
          %v1761 = vld [vmem:[#allocation2 + $0x8] sm:$0xff]
          %v1762 = vld [vmem:[#allocation2 + $0x10] sm:$0xff]
          %v1763 = vld [vmem:[#allocation2 + $0x18] sm:$0xff]
          %v1764 = vld [vmem:[#allocation2 + $0x20] sm:$0xff]
          %v1765 = vld [vmem:[#allocation2 + $0x28] sm:$0xff]
          %v1766 = vld [vmem:[#allocation2 + $0x30] sm:$0xff]
          %v1767 = vld [vmem:[#allocation2 + $0x38] sm:$0xff]
          %1768 = vst.msk [vmem:[%s11] sm:$0xff] %vm691, %v1760
          %1769 = vst.msk [vmem:[%s11 + $0x8] sm:$0xff] %vm691, %v1761
          %1770 = vst.msk [vmem:[%s11 + $0x10] sm:$0xff] %vm691, %v1762
          %1771 = vst.msk [vmem:[%s11 + $0x18] sm:$0xff] %vm691, %v1763
          %1772 = vst.msk [vmem:[%s11 + $0x20] sm:$0xff] %vm691, %v1764
          %1773 = vst.msk [vmem:[%s11 + $0x28] sm:$0xff] %vm691, %v1765
          %1774 = vst.msk [vmem:[%s11 + $0x30] sm:$0xff] %vm691, %v1766
          %1775 = vst.msk [vmem:[%s11 + $0x38] sm:$0xff] %vm691, %v1767
        $region72: #{tpu_custom_call.1} parent=59 // pred_fallthru
          _
        %s1776 = sand.u32 %s250, 1
        %s1777 = scalar_lea.sflag [#allocation9], %s1776
        %s1778 = sand.u32 %s250, 1
        %s1779 = smul.addr %s1778, 4
        %s1780 = scalar_lea.vmem [#allocation10], %s1779
        // Predicated region
        $region73: #{tpu_custom_call.1} parent=59 // pred_check
          %p1781 = pneg %p260
        $region74: #{tpu_custom_call.1} parent=59 // pred_check_branch
          %1783 = sbr.rel (%p1781) target = $region76
        $region75: #{tpu_custom_call.1} parent=59 // pred_region
          %1785 = vsyncadd %s1777, 0
          %s1786 = smul.addr %s27, 2
          %s1787 = smul.addr %s1786, 2
          %s1788 = scalar_lea.hbm %s10, %s1787
          %s1790 = sshll.u32 %s1780, 4
          %s1791 = int_to_ptr.vmem [resolvable:$true] %s1790
          %s1792 = sshll.u32 %s1788, 4
          %s1793 = int_to_ptr.hbm [resolvable:$true] %s1792
          %1795 = dma.vmem_to_hbm [thread:$0]  %s1791, 64, %s1793, %s1777
        $region76: #{tpu_custom_call.1} parent=59 // pred_fallthru
          _
        // Predicated region
        $region77: #{tpu_custom_call.1} parent=59 // pred_check
          %p1796 = pneg %p281
        $region78: #{tpu_custom_call.1} parent=59 // pred_check_branch
          %1798 = sbr.rel (%p1796) target = $region80
        $region79: #{tpu_custom_call.1} parent=59 // pred_region
          _
        $region80: #{tpu_custom_call.1} parent=59 // pred_fallthru
          _
        // Predicated region
        $region81: #{tpu_custom_call.1} parent=59 // pred_check
          %p1799 = pneg %p281
        $region82: #{tpu_custom_call.1} parent=59 // pred_check_branch
          %1801 = sbr.rel (%p1799) target = $region84
        $region83: #{tpu_custom_call.1} parent=59 // pred_region
          _
        $region84: #{tpu_custom_call.1} parent=59 // pred_fallthru
          _
      $region60: #{tpu_custom_call.1} parent=5 // pred_fallthru
        _
      %p1802 = scmp.le.s32.totalorder 2, %s22
      // Predicated region
      $region85: #{tpu_custom_call.1} parent=5 // pred_check
        %p1803 = pneg %p1802
      $region86: #{tpu_custom_call.1} parent=5 // pred_check_branch
        %1805 = sbr.rel (%p1803) target = $region88
      $region87: #{tpu_custom_call.1} parent=5 // pred_region
        %s1806 = ssub.s32 %s22, 2
        // Predicated region
        $region89: #{tpu_custom_call.1} parent=87 // pred_check
          %p1807 = pneg %p266
        $region90: #{tpu_custom_call.1} parent=87 // pred_check_branch
          %1809 = sbr.rel (%p1807) target = $region92
        $region91: #{tpu_custom_call.1} parent=87 // pred_region
          %s1810 = sand.u32 %s251, 1
          %s1811 = scalar_lea.sflag [#allocation9], %s1810
          %s1812 = sand.u32 %s251, 1
          %s1813 = smul.addr %s1812, 4
          %s1814 = scalar_lea.vmem [#allocation10], %s1813
          %1816 = dma.done %s1811, 64
        $region92: #{tpu_custom_call.1} parent=87 // pred_fallthru
          _
      $region88: #{tpu_custom_call.1} parent=5 // pred_fallthru
        _
    $region6: #{tpu_custom_call.1} parent=1 // loop_footer
      %s26 = sadd.s32 1, %s22
    $region7: #{tpu_custom_call.1} parent=1 // loop_footer_branch
      %21 = sbr.rel target = $region3
    $region8: #{tpu_custom_call.1} parent=1 // loop_exit
      _
    %1817 = vsyncpa [#allocation8], 1
    %s1818 = scalar_lea.sflag [#allocation8], 1
    %1819 = vsyncpa %s1818, 1
    %1820 = vsyncpa [#allocation9], 1
    %s1821 = scalar_lea.sflag [#allocation9], 1
    %1822 = vsyncpa %s1821, 1

</llo_original>
